<compile_context>
chip_gen: v7x
topology: tpu7x:2x2x1
jax: 0.10.0
libtpu: 0.0.40
codegen_flags: <defaults>
</compile_context>

<pallas_src>
import jax
import jax.numpy as jnp
from jax import lax
from jax.experimental import pallas as pl
from jax.experimental.pallas import tpu as pltpu


# ----------------------------------------------------------------------------
# Kernel: three MXU dots (conv1+BN1+ReLU, conv2+BN2, skip 1x1+BN_skip),
# residual add and final ReLU, all fused.
# ----------------------------------------------------------------------------
def _resblock_kernel(p_ref, s_ref, w1_ref, b1_ref, w2_ref, ws_ref, b2_ref, o_ref):
    # Stage 1: 3x3 conv (im2col) + folded BN1 + ReLU.  bf16 MXU, f32 accumulate.
    h = jnp.dot(p_ref[...], w1_ref[...], preferred_element_type=jnp.float32)
    h = jnp.maximum(h + b1_ref[...], 0.0)
    # Stage 2: 1x1 conv + folded BN2.  bf16 MXU, f32 accumulate.
    y = jnp.dot(h.astype(jnp.bfloat16), w2_ref[...],
                preferred_element_type=jnp.float32)
    # Skip branch: strided 1x1 conv + folded BN_skip -- a tiny third dot.
    y = y + jnp.dot(s_ref[...], ws_ref[...], preferred_element_type=jnp.float32)
    # Merged (BN2 + BN_skip) bias, residual already summed, final ReLU.
    o_ref[...] = jnp.maximum(y + b2_ref[...], 0.0)


# ----------------------------------------------------------------------------
# Parameter construction (synthetic, inference-mode BN) + BN folding.
# ----------------------------------------------------------------------------
def _fold_bn(gamma, beta, mean, var, eps=1e-5):
    scale = gamma / jnp.sqrt(var + eps)
    bias = beta - mean * scale
    return (scale.reshape(1, -1).astype(jnp.float32),
            bias.reshape(1, -1).astype(jnp.float32))


def init_resblock_params(key, in_channels, out_channels):
    """Deterministic synthetic parameters (inference-mode BatchNorm)."""
    ks = jax.random.split(key, 12)
    cin, cout = in_channels, out_channels
    p = {}
    p["w1"] = jax.random.normal(ks[0], (3, 3, cin, cout), jnp.float32) * 0.1   # HWIO
    p["w2"] = jax.random.normal(ks[1], (cout, cout), jnp.float32) * 0.1        # 1x1
    p["bn1_scale"], p["bn1_bias"] = _fold_bn(
        1.0 + 0.1 * jax.random.normal(ks[2], (cout,)),
        0.1 * jax.random.normal(ks[3], (cout,)),
        0.1 * jax.random.normal(ks[4], (cout,)),
        jax.random.uniform(ks[5], (cout,), minval=0.5, maxval=1.5))
    p["bn2_scale"], p["bn2_bias"] = _fold_bn(
        1.0 + 0.1 * jax.random.normal(ks[6], (cout,)),
        0.1 * jax.random.normal(ks[7], (cout,)),
        0.1 * jax.random.normal(ks[8], (cout,)),
        jax.random.uniform(ks[9], (cout,), minval=0.5, maxval=1.5))
    stride = 1 if cin >= cout else 2
    if stride == 1 and cin == cout:
        # nn.Identity(): uniform representation as 1x1-identity conv + unit BN.
        p["wskip"] = jnp.eye(cin, dtype=jnp.float32)
        p["bns_scale"] = jnp.ones((1, cout), jnp.float32)
        p["bns_bias"] = jnp.zeros((1, cout), jnp.float32)
    else:
        p["wskip"] = jax.random.normal(ks[10], (cin, cout), jnp.float32) * 0.1
        p["bns_scale"], p["bns_bias"] = _fold_bn(
            1.0 + 0.1 * jax.random.normal(ks[11], (cout,)),
            jnp.zeros((cout,)), jnp.zeros((cout,)), jnp.ones((cout,)))
    return p, stride


def _round_up(x, n):
    return ((x + n - 1) // n) * n


def _build_fused_params(params, cin, cout):
    """Fold BN into the weights, zero-pad to lane-dense shapes, cast to bf16."""
    K1 = 9 * cin
    K1p = _round_up(K1, 128)    # lane-dense reduction dim for the conv1 dot
    Csp = _round_up(cin, 128)   # lane-dense reduction dim for the skip dot
    Cp = _round_up(cout, 128)   # lane-dense output width (unmasked vst)

    w1f = params["w1"].reshape(K1, cout) * params["bn1_scale"]   # (K1, Cout)
    w2f = params["w2"] * params["bn2_scale"]                     # (Cout, Cout)
    wsf = params["wskip"] * params["bns_scale"]                  # (Cin, Cout)

    w1p = jnp.zeros((K1p, Cp), jnp.float32).at[:K1, :cout].set(w1f)
    w2p = jnp.zeros((Cp, Cp), jnp.float32).at[:cout, :cout].set(w2f)
    wsp = jnp.zeros((Csp, Cp), jnp.float32).at[:cin, :cout].set(wsf)

    b1 = jnp.zeros((1, Cp), jnp.float32).at[:, :cout].set(params["bn1_bias"])
    b2 = jnp.zeros((1, Cp), jnp.float32).at[:, :cout].set(
        params["bn2_bias"] + params["bns_bias"])

    return (w1p.astype(jnp.bfloat16), b1, w2p.astype(jnp.bfloat16),
            wsp.astype(jnp.bfloat16), b2, K1p, Csp, Cp)


def _pick_row_tile(m):
    """Fixed large tile at real sizes; small problems still get >= 2 grid steps
    (so the 'parallel' M axis can shard across v7x's two TensorCores)."""
    if m >= 512:
        return 256
    return max(8, ((m // 2) // 8) * 8)


# ----------------------------------------------------------------------------
# Forward wrapper.
# ----------------------------------------------------------------------------
def resblock_forward(x_nhwc, params, stride):
    """x_nhwc: (N, H, W, Cin) float32 -> (N, Ho, Wo, Cout) float32."""
    N, H, W, Cin = x_nhwc.shape
    Cout = params["w1"].shape[-1]
    s = stride
    Ho = (H + 2 - 3) // s + 1
    Wo = (W + 2 - 3) // s + 1
    M = N * Ho * Wo
    K1 = 9 * Cin

    # im2col for the 3x3 / pad=1 / stride=s conv (XLA glue; see TODO at top).
    xpad = jnp.pad(x_nhwc, ((0, 0), (1, 1), (1, 1), (0, 0)))
    cols = []
    for dy in range(3):
        for dx in range(3):
            cols.append(xpad[:, dy:dy + s * (Ho - 1) + 1:s,
                             dx:dx + s * (Wo - 1) + 1:s, :])
    patches = jnp.concatenate(cols, axis=-1).reshape(M, K1)

    # Skip-branch input: the strided centre pixels (input of the 1x1/stride-s conv).
    skip = x_nhwc[:, ::s, ::s, :][:, :Ho, :Wo, :].reshape(M, Cin)

    # Fused / padded parameters (BN folded into weights, bf16 for the MXU).
    w1p, b1, w2p, wsp, b2, K1p, Csp, Cp = _build_fused_params(params, Cin, Cout)

    # Row tiling: pad M up to grid*tm, never degrade to tiny tiles.
    tm = _pick_row_tile(M)
    grid_m = pl.cdiv(M, tm)
    Mp = grid_m * tm

    patches = jnp.pad(patches, ((0, Mp - M), (0, K1p - K1))).astype(jnp.bfloat16)
    skip = jnp.pad(skip, ((0, Mp - M), (0, Csp - Cin))).astype(jnp.bfloat16)

    # Explicit VMEM budget: double-buffered varying tiles + resident weights,
    # with 2x headroom, capped at v7x's 64 MiB physical VMEM.
    est = 2 * (2 * tm * K1p + 2 * tm * Csp                 # patches/skip (bf16, x2 buf)
               + K1p * Cp + Cp * Cp + Csp * Cp)            # resident bf16 weights
    est += 2 * Cp * 4 + 2 * tm * Cp * 4 * 2                # f32 biases + dbl-buf f32 out
    vmem_limit = int(min(64 * 1024 * 1024, max(32 * 1024 * 1024, 2 * est)))

    def launch(single_buffer_weights):
        def const_spec(shape):
            # Grid-invariant operand: keep a single resident VMEM buffer.
            if single_buffer_weights:
                return pl.BlockSpec(shape, lambda i: (0,) * len(shape),
                                    pipeline_mode=pl.Buffered(1))
            return pl.BlockSpec(shape, lambda i: (0,) * len(shape))

        return pl.pallas_call(
            _resblock_kernel,
            out_shape=jax.ShapeDtypeStruct((Mp, Cp), jnp.float32),
            grid=(grid_m,),
            in_specs=[
                pl.BlockSpec((tm, K1p), lambda i: (i, 0)),   # im2col patches (row-tiled)
                pl.BlockSpec((tm, Csp), lambda i: (i, 0)),   # skip-branch pixels
                const_spec((K1p, Cp)),                       # conv1 weights (BN1 folded)
                const_spec((1, Cp)),                         # BN1 bias
                const_spec((Cp, Cp)),                        # conv2 weights (BN2 folded)
                const_spec((Csp, Cp)),                       # skip 1x1 weights (BN folded)
                const_spec((1, Cp)),                         # merged BN2 + BN_skip bias
            ],
            out_specs=pl.BlockSpec((tm, Cp), lambda i: (i, 0)),  # lane-dense (Cp = 128k)
            compiler_params=pltpu.CompilerParams(
                dimension_semantics=("parallel",),
                vmem_limit_bytes=vmem_limit),
        )(patches, skip, w1p, b1, w2p, wsp, b2)

    try:
        out_pad = launch(single_buffer_weights=True)
    except Exception:
        # Fallback for jax versions that reject single-buffered pipeline_mode;
        # identical math, just default double-buffered weights.
        out_pad = launch(single_buffer_weights=False)

    return out_pad[:M, :Cout].reshape(N, Ho, Wo, Cout)


# ----------------------------------------------------------------------------
# Pure-JAX reference (lax conv, f32) for correctness checking.
# ----------------------------------------------------------------------------
def resblock_reference(x_nhwc, p, s):
    dn = ("NHWC", "HWIO", "NHWC")
    bcast = lambda v: v.reshape(1, 1, 1, -1)
    h = lax.conv_general_dilated(x_nhwc, p["w1"], (s, s), ((1, 1), (1, 1)),
                                 dimension_numbers=dn)
    h = jnp.maximum(h * bcast(p["bn1_scale"]) + bcast(p["bn1_bias"]), 0.0)
    h2 = lax.conv_general_dilated(h, p["w2"][None, None], (1, 1), "VALID",
                                  dimension_numbers=dn)
    h2 = h2 * bcast(p["bn2_scale"]) + bcast(p["bn2_bias"])
    sk = lax.conv_general_dilated(x_nhwc, p["wskip"][None, None], (s, s), "VALID",
                                  dimension_numbers=dn)
    sk = sk * bcast(p["bns_scale"]) + bcast(p["bns_bias"])
    return jnp.maximum(h2 + sk, 0.0)


if __name__ == "__main__":
    key = jax.random.PRNGKey(0)
    k_x, k_p = jax.random.split(key)

    N, Cin, H, W = 2, 4, 16, 16            # PyTorch NCHW input = (2, 4, 16, 16)
    Cout = 8                               # in < out -> stride defaults to 2
    x_nchw = jax.random.normal(k_x, (N, Cin, H, W), jnp.float32)
    x_nhwc = jnp.transpose(x_nchw, (0, 2, 3, 1))   # kernel layout: NHWC

    params, stride = init_resblock_params(k_p, Cin, Cout)

    out = resblock_forward(x_nhwc, params, stride)
    out = jax.block_until_ready(out)

    ref = resblock_reference(x_nhwc, params, stride)
    assert out.shape == (N, H // stride, W // stride, Cout), out.shape
    # bf16 MXU inputs with f32 accumulation -> looser tolerance than pure f32.
    max_err = float(jnp.abs(out - ref).max())
    assert jnp.allclose(out, ref, atol=5e-2, rtol=5e-2), max_err

    print("KERNEL_OK")
</pallas_src>

<mosaic_0001>
module attributes {stable_mosaic.version = 11 : i64} {
  func.func @_resblock_kernel(%arg0: i32, %arg1: memref<64x128xbf16, #tpu.memory_space<vmem>>, %arg2: memref<64x128xbf16, #tpu.memory_space<vmem>>, %arg3: memref<128x128xbf16, #tpu.memory_space<vmem>>, %arg4: memref<1x128xf32, #tpu.memory_space<vmem>>, %arg5: memref<128x128xbf16, #tpu.memory_space<vmem>>, %arg6: memref<128x128xbf16, #tpu.memory_space<vmem>>, %arg7: memref<1x128xf32, #tpu.memory_space<vmem>>, %arg8: memref<64x128xf32, #tpu.memory_space<vmem>>) attributes {dimension_semantics = [#tpu.dimension_semantics<parallel>], iteration_bounds = array<i64: 2>, scalar_prefetch = 0 : i64, scratch_operands = 0 : i64, tpu.core_type = #tpu.core_type<tc>, window_params = [{transform_indices = @transform_0, window_bounds = array<i64: 64, 128>}, {transform_indices = @transform_1, window_bounds = array<i64: 64, 128>}, {pipeline_mode = #tpu.pipeline_mode<synchronous>, transform_indices = @transform_2, window_bounds = array<i64: 128, 128>}, {pipeline_mode = #tpu.pipeline_mode<synchronous>, transform_indices = @transform_3, window_bounds = array<i64: 1, 128>}, {pipeline_mode = #tpu.pipeline_mode<synchronous>, transform_indices = @transform_4, window_bounds = array<i64: 128, 128>}, {pipeline_mode = #tpu.pipeline_mode<synchronous>, transform_indices = @transform_5, window_bounds = array<i64: 128, 128>}, {pipeline_mode = #tpu.pipeline_mode<synchronous>, transform_indices = @transform_6, window_bounds = array<i64: 1, 128>}, {transform_indices = @transform_7, window_bounds = array<i64: 64, 128>}]} {
    %c0 = arith.constant 0 : index
    %c0_0 = arith.constant 0 : index
    %0 = vector.load %arg1[%c0, %c0_0] : memref<64x128xbf16, #tpu.memory_space<vmem>>, vector<64x128xbf16>
    %c0_1 = arith.constant 0 : index
    %c0_2 = arith.constant 0 : index
    %1 = vector.load %arg3[%c0_1, %c0_2] : memref<128x128xbf16, #tpu.memory_space<vmem>>, vector<128x128xbf16>
    %cst = arith.constant dense<0.000000e+00> : vector<64x128xf32>
    %2 = tpu.matmul %0, %1, %cst {dimension_numbers = #tpu.dot_dimension_numbers<[1], [0], [0], [1], [0, 0, 1, 1], [], []>} : vector<64x128xbf16>, vector<128x128xbf16>, vector<64x128xf32> -> vector<64x128xf32>
    %c0_3 = arith.constant 0 : index
    %c0_4 = arith.constant 0 : index
    %3 = vector.load %arg4[%c0_3, %c0_4] : memref<1x128xf32, #tpu.memory_space<vmem>>, vector<1x128xf32>
    %4 = vector.broadcast %3 : vector<1x128xf32> to vector<64x128xf32>
    %5 = arith.addf %2, %4 : vector<64x128xf32>
    %cst_5 = arith.constant 0.000000e+00 : f32
    %6 = vector.broadcast %cst_5 : f32 to vector<64x128xf32>
    %7 = arith.maximumf %5, %6 : vector<64x128xf32>
    %8 = arith.truncf %7 : vector<64x128xf32> to vector<64x128xbf16>
    %c0_6 = arith.constant 0 : index
    %c0_7 = arith.constant 0 : index
    %9 = vector.load %arg5[%c0_6, %c0_7] : memref<128x128xbf16, #tpu.memory_space<vmem>>, vector<128x128xbf16>
    %cst_8 = arith.constant dense<0.000000e+00> : vector<64x128xf32>
    %10 = tpu.matmul %8, %9, %cst_8 {dimension_numbers = #tpu.dot_dimension_numbers<[1], [0], [0], [1], [0, 0, 1, 1], [], []>} : vector<64x128xbf16>, vector<128x128xbf16>, vector<64x128xf32> -> vector<64x128xf32>
    %c0_9 = arith.constant 0 : index
    %c0_10 = arith.constant 0 : index
    %11 = vector.load %arg2[%c0_9, %c0_10] : memref<64x128xbf16, #tpu.memory_space<vmem>>, vector<64x128xbf16>
    %c0_11 = arith.constant 0 : index
    %c0_12 = arith.constant 0 : index
    %12 = vector.load %arg6[%c0_11, %c0_12] : memref<128x128xbf16, #tpu.memory_space<vmem>>, vector<128x128xbf16>
    %cst_13 = arith.constant dense<0.000000e+00> : vector<64x128xf32>
    %13 = tpu.matmul %11, %12, %cst_13 {dimension_numbers = #tpu.dot_dimension_numbers<[1], [0], [0], [1], [0, 0, 1, 1], [], []>} : vector<64x128xbf16>, vector<128x128xbf16>, vector<64x128xf32> -> vector<64x128xf32>
    %14 = arith.addf %10, %13 : vector<64x128xf32>
    %c0_14 = arith.constant 0 : index
    %c0_15 = arith.constant 0 : index
    %15 = vector.load %arg7[%c0_14, %c0_15] : memref<1x128xf32, #tpu.memory_space<vmem>>, vector<1x128xf32>
    %16 = vector.broadcast %15 : vector<1x128xf32> to vector<64x128xf32>
    %17 = arith.addf %14, %16 : vector<64x128xf32>
    %cst_16 = arith.constant 0.000000e+00 : f32
    %18 = vector.broadcast %cst_16 : f32 to vector<64x128xf32>
    %19 = arith.maximumf %17, %18 : vector<64x128xf32>
    %c0_17 = arith.constant 0 : index
    %c0_18 = arith.constant 0 : index
    %20 = vector.load %arg8[%c0_17, %c0_18] : memref<64x128xf32, #tpu.memory_space<vmem>>, vector<64x128xf32>
    tpu.vector_store %arg8[%c0_17, %c0_18], %19 {strides = array<i32>} : memref<64x128xf32, #tpu.memory_space<vmem>>, vector<64x128xf32>,
    return
  }
  func.func @transform_0(%arg0: i32) -> (i32, i32) {
    %c0_i32 = arith.constant 0 : i32
    %c0_i32_0 = arith.constant 0 : i32
    return %arg0, %c0_i32 : i32, i32
  }
  func.func @transform_1(%arg0: i32) -> (i32, i32) {
    %c0_i32 = arith.constant 0 : i32
    %c0_i32_0 = arith.constant 0 : i32
    return %arg0, %c0_i32 : i32, i32
  }
  func.func @transform_2(%arg0: i32) -> (i32, i32) {
    %c0_i32 = arith.constant 0 : i32
    %c0_i32_0 = arith.constant 0 : i32
    %c0_i32_1 = arith.constant 0 : i32
    return %c0_i32, %c0_i32_0 : i32, i32
  }
  func.func @transform_3(%arg0: i32) -> (i32, i32) {
    %c0_i32 = arith.constant 0 : i32
    %c0_i32_0 = arith.constant 0 : i32
    %c0_i32_1 = arith.constant 0 : i32
    return %c0_i32, %c0_i32_0 : i32, i32
  }
  func.func @transform_4(%arg0: i32) -> (i32, i32) {
    %c0_i32 = arith.constant 0 : i32
    %c0_i32_0 = arith.constant 0 : i32
    %c0_i32_1 = arith.constant 0 : i32
    return %c0_i32, %c0_i32_0 : i32, i32
  }
  func.func @transform_5(%arg0: i32) -> (i32, i32) {
    %c0_i32 = arith.constant 0 : i32
    %c0_i32_0 = arith.constant 0 : i32
    %c0_i32_1 = arith.constant 0 : i32
    return %c0_i32, %c0_i32_0 : i32, i32
  }
  func.func @transform_6(%arg0: i32) -> (i32, i32) {
    %c0_i32 = arith.constant 0 : i32
    %c0_i32_0 = arith.constant 0 : i32
    %c0_i32_1 = arith.constant 0 : i32
    return %c0_i32, %c0_i32_0 : i32, i32
  }
  func.func @transform_7(%arg0: i32) -> (i32, i32) {
    %c0_i32 = arith.constant 0 : i32
    %c0_i32_0 = arith.constant 0 : i32
    return %arg0, %c0_i32 : i32, i32
  }
}

module attributes {stable_mosaic.version = 11 : i64} {
  func.func @_resblock_kernel(%arg0: i32, %arg1: memref<64x128xbf16, #tpu.memory_space<vmem>>, %arg2: memref<64x128xbf16, #tpu.memory_space<vmem>>, %arg3: memref<128x128xbf16, #tpu.memory_space<vmem>>, %arg4: memref<1x128xf32, #tpu.memory_space<vmem>>, %arg5: memref<128x128xbf16, #tpu.memory_space<vmem>>, %arg6: memref<128x128xbf16, #tpu.memory_space<vmem>>, %arg7: memref<1x128xf32, #tpu.memory_space<vmem>>, %arg8: memref<64x128xf32, #tpu.memory_space<vmem>>) attributes {dimension_semantics = [#tpu.dimension_semantics<parallel>], iteration_bounds = array<i64: 2>, scalar_prefetch = 0 : i64, scratch_operands = 0 : i64, tpu.core_type = #tpu.core_type<tc>, window_params = [{transform_indices = @transform_0, window_bounds = array<i64: 64, 128>}, {transform_indices = @transform_1, window_bounds = array<i64: 64, 128>}, {pipeline_mode = #tpu.pipeline_mode<synchronous>, transform_indices = @transform_2, window_bounds = array<i64: 128, 128>}, {pipeline_mode = #tpu.pipeline_mode<synchronous>, transform_indices = @transform_3, window_bounds = array<i64: 1, 128>}, {pipeline_mode = #tpu.pipeline_mode<synchronous>, transform_indices = @transform_4, window_bounds = array<i64: 128, 128>}, {pipeline_mode = #tpu.pipeline_mode<synchronous>, transform_indices = @transform_5, window_bounds = array<i64: 128, 128>}, {pipeline_mode = #tpu.pipeline_mode<synchronous>, transform_indices = @transform_6, window_bounds = array<i64: 1, 128>}, {transform_indices = @transform_7, window_bounds = array<i64: 64, 128>}]} {
    %c0 = arith.constant 0 : index
    %c0_0 = arith.constant 0 : index
    %0 = vector.load %arg1[%c0, %c0_0] : memref<64x128xbf16, #tpu.memory_space<vmem>>, vector<64x128xbf16>
    %c0_1 = arith.constant 0 : index
    %c0_2 = arith.constant 0 : index
    %1 = vector.load %arg3[%c0_1, %c0_2] : memref<128x128xbf16, #tpu.memory_space<vmem>>, vector<128x128xbf16>
    %cst = arith.constant dense<0.000000e+00> : vector<64x128xf32>
    %2 = tpu.matmul %0, %1, %cst {dimension_numbers = #tpu.dot_dimension_numbers<[1], [0], [0], [1], [0, 0, 1, 1], [], []>} : vector<64x128xbf16>, vector<128x128xbf16>, vector<64x128xf32> -> vector<64x128xf32>
    %c0_3 = arith.constant 0 : index
    %c0_4 = arith.constant 0 : index
    %3 = vector.load %arg4[%c0_3, %c0_4] : memref<1x128xf32, #tpu.memory_space<vmem>>, vector<1x128xf32>
    %4 = vector.broadcast %3 : vector<1x128xf32> to vector<64x128xf32>
    %5 = arith.addf %2, %4 : vector<64x128xf32>
    %cst_5 = arith.constant 0.000000e+00 : f32
    %6 = vector.broadcast %cst_5 : f32 to vector<64x128xf32>
    %7 = arith.maximumf %5, %6 : vector<64x128xf32>
    %8 = arith.truncf %7 : vector<64x128xf32> to vector<64x128xbf16>
    %c0_6 = arith.constant 0 : index
    %c0_7 = arith.constant 0 : index
    %9 = vector.load %arg5[%c0_6, %c0_7] : memref<128x128xbf16, #tpu.memory_space<vmem>>, vector<128x128xbf16>
    %cst_8 = arith.constant dense<0.000000e+00> : vector<64x128xf32>
    %10 = tpu.matmul %8, %9, %cst_8 {dimension_numbers = #tpu.dot_dimension_numbers<[1], [0], [0], [1], [0, 0, 1, 1], [], []>} : vector<64x128xbf16>, vector<128x128xbf16>, vector<64x128xf32> -> vector<64x128xf32>
    %c0_9 = arith.constant 0 : index
    %c0_10 = arith.constant 0 : index
    %11 = vector.load %arg2[%c0_9, %c0_10] : memref<64x128xbf16, #tpu.memory_space<vmem>>, vector<64x128xbf16>
    %c0_11 = arith.constant 0 : index
    %c0_12 = arith.constant 0 : index
    %12 = vector.load %arg6[%c0_11, %c0_12] : memref<128x128xbf16, #tpu.memory_space<vmem>>, vector<128x128xbf16>
    %cst_13 = arith.constant dense<0.000000e+00> : vector<64x128xf32>
    %13 = tpu.matmul %11, %12, %cst_13 {dimension_numbers = #tpu.dot_dimension_numbers<[1], [0], [0], [1], [0, 0, 1, 1], [], []>} : vector<64x128xbf16>, vector<128x128xbf16>, vector<64x128xf32> -> vector<64x128xf32>
    %14 = arith.addf %10, %13 : vector<64x128xf32>
    %c0_14 = arith.constant 0 : index
    %c0_15 = arith.constant 0 : index
    %15 = vector.load %arg7[%c0_14, %c0_15] : memref<1x128xf32, #tpu.memory_space<vmem>>, vector<1x128xf32>
    %16 = vector.broadcast %15 : vector<1x128xf32> to vector<64x128xf32>
    %17 = arith.addf %14, %16 : vector<64x128xf32>
    %cst_16 = arith.constant 0.000000e+00 : f32
    %18 = vector.broadcast %cst_16 : f32 to vector<64x128xf32>
    %19 = arith.maximumf %17, %18 : vector<64x128xf32>
    %c0_17 = arith.constant 0 : index
    %c0_18 = arith.constant 0 : index
    %20 = vector.load %arg8[%c0_17, %c0_18] : memref<64x128xf32, #tpu.memory_space<vmem>>, vector<64x128xf32>
    tpu.vector_store %arg8[%c0_17, %c0_18], %19 {strides = array<i32>} : memref<64x128xf32, #tpu.memory_space<vmem>>, vector<64x128xf32>,
    return
  }
  func.func @transform_0(%arg0: i32) -> (i32, i32) {
    %c0_i32 = arith.constant 0 : i32
    %c0_i32_0 = arith.constant 0 : i32
    return %arg0, %c0_i32 : i32, i32
  }
  func.func @transform_1(%arg0: i32) -> (i32, i32) {
    %c0_i32 = arith.constant 0 : i32
    %c0_i32_0 = arith.constant 0 : i32
    return %arg0, %c0_i32 : i32, i32
  }
  func.func @transform_2(%arg0: i32) -> (i32, i32) {
    %c0_i32 = arith.constant 0 : i32
    %c0_i32_0 = arith.constant 0 : i32
    %c0_i32_1 = arith.constant 0 : i32
    return %c0_i32, %c0_i32_0 : i32, i32
  }
  func.func @transform_3(%arg0: i32) -> (i32, i32) {
    %c0_i32 = arith.constant 0 : i32
    %c0_i32_0 = arith.constant 0 : i32
    %c0_i32_1 = arith.constant 0 : i32
    return %c0_i32, %c0_i32_0 : i32, i32
  }
  func.func @transform_4(%arg0: i32) -> (i32, i32) {
    %c0_i32 = arith.constant 0 : i32
    %c0_i32_0 = arith.constant 0 : i32
    %c0_i32_1 = arith.constant 0 : i32
    return %c0_i32, %c0_i32_0 : i32, i32
  }
  func.func @transform_5(%arg0: i32) -> (i32, i32) {
    %c0_i32 = arith.constant 0 : i32
    %c0_i32_0 = arith.constant 0 : i32
    %c0_i32_1 = arith.constant 0 : i32
    return %c0_i32, %c0_i32_0 : i32, i32
  }
  func.func @transform_6(%arg0: i32) -> (i32, i32) {
    %c0_i32 = arith.constant 0 : i32
    %c0_i32_0 = arith.constant 0 : i32
    %c0_i32_1 = arith.constant 0 : i32
    return %c0_i32, %c0_i32_0 : i32, i32
  }
  func.func @transform_7(%arg0: i32) -> (i32, i32) {
    %c0_i32 = arith.constant 0 : i32
    %c0_i32_0 = arith.constant 0 : i32
    return %arg0, %c0_i32 : i32, i32
  }
}

</mosaic_0001>

<llo_original>
// kernel: tpu_custom_call.1
$region0: #{tpu_custom_call.1}
  #allocation0 [shape = 'u32[]', space=smem, size = 0x4, offset = 0x4, fixed_abs, tag = 'smem constant byte address 0x4 - core index']
  #allocation1 [shape = 'u32[144,128]{1,0:T(1,128)}', space=vmem, size = 0x12000, scoped, tag = 'internal scratch']
  %s0 = inlined_call_operand.hbm [shape: bf16[128,128], index: 0, kind: input, shape index: {}]
  %s1 = inlined_call_operand.hbm [shape: bf16[128,128], index: 1, kind: input, shape index: {}]
  %s2 = inlined_call_operand.hbm [shape: bf16[128,128], index: 2, kind: input, shape index: {}]
  %s3 = inlined_call_operand.vmem [shape: f32[1,128], index: 3, kind: input, shape index: {}]
  %s4 = inlined_call_operand.hbm [shape: bf16[128,128], index: 4, kind: input, shape index: {}]
  %s5 = inlined_call_operand.hbm [shape: bf16[128,128], index: 5, kind: input, shape index: {}]
  %s6 = inlined_call_operand.vmem [shape: f32[1,128], index: 6, kind: input, shape index: {}]
  %s7 = inlined_call_operand.hbm [shape: f32[128,128], index: 7, kind: output, shape index: {}]
  %s8 = sld [smem:[#allocation0]]
  $region81: #{tpu_custom_call.1} parent=0
    _
  %s10 = ssub.s32 1, %s8
  %s11 = scalar_select 0, %s10, %s8
  $region1: #{tpu_custom_call.1} parent=0
    #allocation2 [shape = 'u8[32768]{0}', space=vmem, size = 0x8000, scoped, tag = 'input window, operand 0']
    #allocation3 [shape = 's32[2]{0}', space=sflag, size = 0x8, scoped, tag = 'scoped memory for tpu_custom_call.1']
    #allocation4 [shape = 's32[2]{0}', space=sflag, size = 0x8, scoped, tag = 'scoped memory for tpu_custom_call.1']
    #allocation5 [shape = 'u8[32768]{0}', space=vmem, size = 0x8000, scoped, tag = 'input window, operand 1']
    #allocation6 [shape = 's32[2]{0}', space=sflag, size = 0x8, scoped, tag = 'scoped memory for tpu_custom_call.1']
    #allocation7 [shape = 'u8[32768]{0}', space=vmem, size = 0x8000, scoped, tag = 'input window, operand 2, single buffered']
    #allocation8 [shape = 'u8[32768]{0}', space=vmem, size = 0x8000, scoped, tag = 'input window, operand 4, single buffered']
    #allocation9 [shape = 's32[1]{0}', space=sflag, size = 0x4, scoped, tag = 'scoped memory for tpu_custom_call.1']
    #allocation10 [shape = 'u8[32768]{0}', space=vmem, size = 0x8000, scoped, tag = 'input window, operand 5, single buffered']
    #allocation11 [shape = 'u8[65536]{0}', space=vmem, size = 0x10000, scoped, tag = 'output window, operand 0']
    %12 = vsyncpa [#allocation3], 0
    %s13 = scalar_lea.sflag [#allocation3], 1
    %14 = vsyncpa %s13, 0
    %15 = vsyncpa [#allocation6], 0
    %s16 = scalar_lea.sflag [#allocation6], 1
    %17 = vsyncpa %s16, 0
    %18 = vsyncpa [#allocation9], 0
    %19 = vsyncpa [#allocation4], 0
    %s20 = scalar_lea.sflag [#allocation4], 1
    %21 = vsyncpa %s20, 0
    loop: start=0, step=1, limit=4
    $region2: #{tpu_custom_call.1} parent=1 // loop_pre_header
      _
    $region3: #{tpu_custom_call.1} parent=1 // loop_header
      %s23 = sphi 0, %s27
      %p24 = scmp.ge.s32.totalorder %s23, 4
      %s33 = sphi 0, %s35
      %s36 = sphi 0, %s33
      %s37 = sphi 0, %s36
      %s53 = sphi 0, %s37
      %s59 = sphi 0, %s61
      %s62 = sphi 0, %s59
      %s63 = sphi 0, %s62
      %s79 = sphi 0, %s63
      %s83 = sphi 0, %s83
      %s85 = sphi 0, %s83
      %s86 = sphi 0, %s85
      %s100 = sphi 0, %s86
      %s104 = sphi 0, %s104
      %s106 = sphi 0, %s104
      %s107 = sphi 0, %s106
      %s121 = sphi 0, %s107
      %s125 = sphi 0, %s125
      %s127 = sphi 0, %s125
      %s128 = sphi 0, %s127
      %s142 = sphi 0, %s128
      %s146 = sphi 0, %s146
      %s148 = sphi 0, %s146
      %s149 = sphi 0, %s148
      %s163 = sphi 0, %s149
      %s167 = sphi 0, %s167
      %s169 = sphi 0, %s167
      %s170 = sphi 0, %s169
      %s184 = sphi 0, %s170
      %s190 = sphi 0, %s192
      %s193 = sphi 0, %s190
      %s194 = sphi 0, %s193
      %s210 = sphi 0, %s194
    $region4: #{tpu_custom_call.1} parent=1 // loop_header_branch
      %26 = sbr.rel (%p24) target = $region8
    $region5: #{tpu_custom_call.1} parent=1 // loop_body
      %s28 = ssub.s32 %s23, 1
      %s29 = ssub.s32 %s23, 2
      %s30 = sadd.s32 %s23, 1
      %s31 = ssub.s32 %s23, %s30
      %p32 = scmp.eq.s32.totalorder %s31, 0
      %s34 = sadd.s32 %s33, 1
      %s35 = scalar_select %p32, %s33, %s34
      %p38 = pneg %p32
      %p39 = scmp.eq.s32.totalorder %s23, 1
      %p40 = por %p38, %p39
      %p41 = scmp.ne.s32.totalorder %s33, %s36
      %p42 = scmp.eq.s32.totalorder %s23, 0
      %p43 = por %p41, %p42
      %p44 = scmp.ne.s32.totalorder %s33, %s36
      %p45 = scmp.eq.s32.totalorder %s28, 1
      %p46 = por %p44, %p45
      %p47 = scmp.ne.s32.totalorder %s36, %s37
      %p48 = scmp.eq.s32.totalorder %s28, 0
      %p49 = por %p47, %p48
      %p50 = scmp.ne.s32.totalorder %s36, %s37
      %p51 = scmp.eq.s32.totalorder %s29, 1
      %p52 = por %p50, %p51
      %p54 = scmp.ne.s32.totalorder %s37, %s53
      %p55 = scmp.eq.s32.totalorder %s29, 0
      %p56 = por %p54, %p55
      %s57 = ssub.s32 %s23, %s30
      %p58 = scmp.eq.s32.totalorder %s57, 0
      %s60 = sadd.s32 %s59, 1
      %s61 = scalar_select %p58, %s59, %s60
      %p64 = pneg %p58
      %p65 = scmp.eq.s32.totalorder %s23, 1
      %p66 = por %p64, %p65
      %p67 = scmp.ne.s32.totalorder %s59, %s62
      %p68 = scmp.eq.s32.totalorder %s23, 0
      %p69 = por %p67, %p68
      %p70 = scmp.ne.s32.totalorder %s59, %s62
      %p71 = scmp.eq.s32.totalorder %s28, 1
      %p72 = por %p70, %p71
      %p73 = scmp.ne.s32.totalorder %s62, %s63
      %p74 = scmp.eq.s32.totalorder %s28, 0
      %p75 = por %p73, %p74
      %p76 = scmp.ne.s32.totalorder %s62, %s63
      %p77 = scmp.eq.s32.totalorder %s29, 1
      %p78 = por %p76, %p77
      %p80 = scmp.ne.s32.totalorder %s63, %s79
      %p81 = scmp.eq.s32.totalorder %s29, 0
      %p82 = por %p80, %p81
      %s84 = sadd.s32 %s83, 1
      %p87 = scmp.eq.s32.totalorder %s23, 1
      %p88 = scmp.ne.s32.totalorder %s83, %s85
      %p89 = scmp.eq.s32.totalorder %s23, 0
      %p90 = por %p88, %p89
      %p91 = scmp.ne.s32.totalorder %s83, %s85
      %p92 = scmp.eq.s32.totalorder %s28, 1
      %p93 = por %p91, %p92
      %p94 = scmp.ne.s32.totalorder %s85, %s86
      %p95 = scmp.eq.s32.totalorder %s28, 0
      %p96 = por %p94, %p95
      %p97 = scmp.ne.s32.totalorder %s85, %s86
      %p98 = scmp.eq.s32.totalorder %s29, 1
      %p99 = por %p97, %p98
      %p101 = scmp.ne.s32.totalorder %s86, %s100
      %p102 = scmp.eq.s32.totalorder %s29, 0
      %p103 = por %p101, %p102
      %s105 = sadd.s32 %s104, 1
      %p108 = scmp.eq.s32.totalorder %s23, 1
      %p109 = scmp.ne.s32.totalorder %s104, %s106
      %p110 = scmp.eq.s32.totalorder %s23, 0
      %p111 = por %p109, %p110
      %p112 = scmp.ne.s32.totalorder %s104, %s106
      %p113 = scmp.eq.s32.totalorder %s28, 1
      %p114 = por %p112, %p113
      %p115 = scmp.ne.s32.totalorder %s106, %s107
      %p116 = scmp.eq.s32.totalorder %s28, 0
      %p117 = por %p115, %p116
      %p118 = scmp.ne.s32.totalorder %s106, %s107
      %p119 = scmp.eq.s32.totalorder %s29, 1
      %p120 = por %p118, %p119
      %p122 = scmp.ne.s32.totalorder %s107, %s121
      %p123 = scmp.eq.s32.totalorder %s29, 0
      %p124 = por %p122, %p123
      %s126 = sadd.s32 %s125, 1
      %p129 = scmp.eq.s32.totalorder %s23, 1
      %p130 = scmp.ne.s32.totalorder %s125, %s127
      %p131 = scmp.eq.s32.totalorder %s23, 0
      %p132 = por %p130, %p131
      %p133 = scmp.ne.s32.totalorder %s125, %s127
      %p134 = scmp.eq.s32.totalorder %s28, 1
      %p135 = por %p133, %p134
      %p136 = scmp.ne.s32.totalorder %s127, %s128
      %p137 = scmp.eq.s32.totalorder %s28, 0
      %p138 = por %p136, %p137
      %p139 = scmp.ne.s32.totalorder %s127, %s128
      %p140 = scmp.eq.s32.totalorder %s29, 1
      %p141 = por %p139, %p140
      %p143 = scmp.ne.s32.totalorder %s128, %s142
      %p144 = scmp.eq.s32.totalorder %s29, 0
      %p145 = por %p143, %p144
      %s147 = sadd.s32 %s146, 1
      %p150 = scmp.eq.s32.totalorder %s23, 1
      %p151 = scmp.ne.s32.totalorder %s146, %s148
      %p152 = scmp.eq.s32.totalorder %s23, 0
      %p153 = por %p151, %p152
      %p154 = scmp.ne.s32.totalorder %s146, %s148
      %p155 = scmp.eq.s32.totalorder %s28, 1
      %p156 = por %p154, %p155
      %p157 = scmp.ne.s32.totalorder %s148, %s149
      %p158 = scmp.eq.s32.totalorder %s28, 0
      %p159 = por %p157, %p158
      %p160 = scmp.ne.s32.totalorder %s148, %s149
      %p161 = scmp.eq.s32.totalorder %s29, 1
      %p162 = por %p160, %p161
      %p164 = scmp.ne.s32.totalorder %s149, %s163
      %p165 = scmp.eq.s32.totalorder %s29, 0
      %p166 = por %p164, %p165
      %s168 = sadd.s32 %s167, 1
      %p171 = scmp.eq.s32.totalorder %s23, 1
      %p172 = scmp.ne.s32.totalorder %s167, %s169
      %p173 = scmp.eq.s32.totalorder %s23, 0
      %p174 = por %p172, %p173
      %p175 = scmp.ne.s32.totalorder %s167, %s169
      %p176 = scmp.eq.s32.totalorder %s28, 1
      %p177 = por %p175, %p176
      %p178 = scmp.ne.s32.totalorder %s169, %s170
      %p179 = scmp.eq.s32.totalorder %s28, 0
      %p180 = por %p178, %p179
      %p181 = scmp.ne.s32.totalorder %s169, %s170
      %p182 = scmp.eq.s32.totalorder %s29, 1
      %p183 = por %p181, %p182
      %p185 = scmp.ne.s32.totalorder %s170, %s184
      %p186 = scmp.eq.s32.totalorder %s29, 0
      %p187 = por %p185, %p186
      %s188 = ssub.s32 %s23, %s30
      %p189 = scmp.eq.s32.totalorder %s188, 0
      %s191 = sadd.s32 %s190, 1
      %s192 = scalar_select %p189, %s190, %s191
      %p195 = pneg %p189
      %p196 = scmp.eq.s32.totalorder %s23, 1
      %p197 = por %p195, %p196
      %p198 = scmp.ne.s32.totalorder %s190, %s193
      %p199 = scmp.eq.s32.totalorder %s23, 0
      %p200 = por %p198, %p199
      %p201 = scmp.ne.s32.totalorder %s190, %s193
      %p202 = scmp.eq.s32.totalorder %s28, 1
      %p203 = por %p201, %p202
      %p204 = scmp.ne.s32.totalorder %s193, %s194
      %p205 = scmp.eq.s32.totalorder %s28, 0
      %p206 = por %p204, %p205
      %p207 = scmp.ne.s32.totalorder %s193, %s194
      %p208 = scmp.eq.s32.totalorder %s29, 1
      %p209 = por %p207, %p208
      %p211 = scmp.ne.s32.totalorder %s194, %s210
      %p212 = scmp.eq.s32.totalorder %s29, 0
      %p213 = por %p211, %p212
      %p214 = scmp.le.s32.totalorder 1, %s23
      %p215 = scmp.lt.s32.totalorder %s23, 3
      %p216 = pnand %p214, %p215
      %p217 = pneg %p216
      // Predicated region
      $region9: #{tpu_custom_call.1} parent=5 // pred_check
        _
      $region10: #{tpu_custom_call.1} parent=5 // pred_check_branch
        %219 = sbr.rel (%p216) target = $region12
      $region11: #{tpu_custom_call.1} parent=5 // pred_region
        %s220 = ssub.s32 %s23, 1
        // Predicated region
        $region13: #{tpu_custom_call.1} parent=11 // pred_check
          %p221 = pneg %p96
        $region14: #{tpu_custom_call.1} parent=11 // pred_check_branch
          %223 = sbr.rel (%p221) target = $region16
        $region15: #{tpu_custom_call.1} parent=11 // pred_region
          %s225 = ssub.s32 1024, 1024
          %226 = vsyncadd [#allocation6], %s225
          %s227 = sshll.u32 [#allocation7], 4
          %s228 = int_to_ptr.vmem [resolvable:$true] %s227
          %233 = dma.hbm_to_vmem [thread:$0]  %s2, 1024, %s228, [#allocation6], 64, 64, 4
        $region16: #{tpu_custom_call.1} parent=11 // pred_fallthru
          _
        // Predicated region
        $region17: #{tpu_custom_call.1} parent=11 // pred_check
          %p234 = pneg %p117
        $region18: #{tpu_custom_call.1} parent=11 // pred_check_branch
          %236 = sbr.rel (%p234) target = $region20
        $region19: #{tpu_custom_call.1} parent=11 // pred_region
          _
        $region20: #{tpu_custom_call.1} parent=11 // pred_fallthru
          _
        // Predicated region
        $region21: #{tpu_custom_call.1} parent=11 // pred_check
          %p237 = pneg %p138
        $region22: #{tpu_custom_call.1} parent=11 // pred_check_branch
          %239 = sbr.rel (%p237) target = $region24
        $region23: #{tpu_custom_call.1} parent=11 // pred_region
          %s241 = ssub.s32 1024, 1024
          %242 = vsyncadd [#allocation9], %s241
          %s243 = sshll.u32 [#allocation8], 4
          %s244 = int_to_ptr.vmem [resolvable:$true] %s243
          %249 = dma.hbm_to_vmem [thread:$0]  %s4, 1024, %s244, [#allocation9], 64, 64, 4
        $region24: #{tpu_custom_call.1} parent=11 // pred_fallthru
          _
        // Predicated region
        $region25: #{tpu_custom_call.1} parent=11 // pred_check
          %p250 = pneg %p159
        $region26: #{tpu_custom_call.1} parent=11 // pred_check_branch
          %252 = sbr.rel (%p250) target = $region28
        $region27: #{tpu_custom_call.1} parent=11 // pred_region
          %s254 = ssub.s32 1024, 1024
          %255 = vsyncadd [#allocation9], %s254
          %s256 = sshll.u32 [#allocation10], 4
          %s257 = int_to_ptr.vmem [resolvable:$true] %s256
          %262 = dma.hbm_to_vmem [thread:$0]  %s5, 1024, %s257, [#allocation9], 64, 64, 4
        $region28: #{tpu_custom_call.1} parent=11 // pred_fallthru
          _
        // Predicated region
        $region29: #{tpu_custom_call.1} parent=11 // pred_check
          %p263 = pneg %p180
        $region30: #{tpu_custom_call.1} parent=11 // pred_check_branch
          %265 = sbr.rel (%p263) target = $region32
        $region31: #{tpu_custom_call.1} parent=11 // pred_region
          _
        $region32: #{tpu_custom_call.1} parent=11 // pred_fallthru
          _
      $region12: #{tpu_custom_call.1} parent=5 // pred_fallthru
        _
      %p266 = scmp.lt.s32.totalorder %s23, 2
      // Predicated region
      $region33: #{tpu_custom_call.1} parent=5 // pred_check
        %p267 = pneg %p266
      $region34: #{tpu_custom_call.1} parent=5 // pred_check_branch
        %269 = sbr.rel (%p267) target = $region36
      $region35: #{tpu_custom_call.1} parent=5 // pred_region
        // Predicated region
        $region37: #{tpu_custom_call.1} parent=35 // pred_check
          %p270 = pneg %p43
        $region38: #{tpu_custom_call.1} parent=35 // pred_check_branch
          %272 = sbr.rel (%p270) target = $region40
        $region39: #{tpu_custom_call.1} parent=35 // pred_region
          %s273 = sand.u32 %s33, 1
          %s274 = scalar_lea.sflag [#allocation3], %s273
          %s275 = sand.u32 %s33, 1
          %s276 = smul.addr %s275, 32
          %s277 = scalar_lea.vmem [#allocation2], %s276
          %s278 = smul.u32 8, %s23
          %s280 = ssub.s32 512, 512
          %281 = vsyncadd %s274, %s280
          %s282 = smul.addr %s278, 64
          %s283 = scalar_lea.hbm %s0, %s282
          %s284 = sshll.u32 %s277, 4
          %s285 = int_to_ptr.vmem [resolvable:$true] %s284
          %290 = dma.hbm_to_vmem [thread:$0]  %s283, 512, %s285, %s274, 64, 64, 4
        $region40: #{tpu_custom_call.1} parent=35 // pred_fallthru
          _
        // Predicated region
        $region41: #{tpu_custom_call.1} parent=35 // pred_check
          %p291 = pneg %p69
        $region42: #{tpu_custom_call.1} parent=35 // pred_check_branch
          %293 = sbr.rel (%p291) target = $region44
        $region43: #{tpu_custom_call.1} parent=35 // pred_region
          %s294 = sand.u32 %s23, 1
          %s295 = scalar_lea.sflag [#allocation6], %s294
          %s296 = sand.u32 %s59, 1
          %s297 = smul.addr %s296, 32
          %s298 = scalar_lea.vmem [#allocation5], %s297
          %s299 = smul.u32 8, %s23
          %s301 = ssub.s32 512, 512
          %302 = vsyncadd %s295, %s301
          %s303 = smul.addr %s299, 64
          %s304 = scalar_lea.hbm %s1, %s303
          %s305 = sshll.u32 %s298, 4
          %s306 = int_to_ptr.vmem [resolvable:$true] %s305
          %311 = dma.hbm_to_vmem [thread:$0]  %s304, 512, %s306, %s295, 64, 64, 4
        $region44: #{tpu_custom_call.1} parent=35 // pred_fallthru
          _
      $region36: #{tpu_custom_call.1} parent=5 // pred_fallthru
        _
      %p312 = scmp.le.s32.totalorder 1, %s23
      %p313 = scmp.lt.s32.totalorder %s23, 3
      %p314 = pnand %p312, %p313
      %p315 = pneg %p314
      // Predicated region
      $region45: #{tpu_custom_call.1} parent=5 // pred_check
        _
      $region46: #{tpu_custom_call.1} parent=5 // pred_check_branch
        %317 = sbr.rel (%p314) target = $region48
      $region47: #{tpu_custom_call.1} parent=5 // pred_region
        %s318 = ssub.s32 %s23, 1
        %s319 = sand.u32 %s36, 1
        %s320 = scalar_lea.sflag [#allocation3], %s319
        %s321 = sand.u32 %s36, 1
        %s322 = smul.addr %s321, 32
        %s323 = scalar_lea.vmem [#allocation2], %s322
        // Predicated region
        $region49: #{tpu_custom_call.1} parent=47 // pred_check
          %p324 = pneg %p49
        $region50: #{tpu_custom_call.1} parent=47 // pred_check_branch
          %326 = sbr.rel (%p324) target = $region52
        $region51: #{tpu_custom_call.1} parent=47 // pred_region
          %327 = dma.done %s320, 512
        $region52: #{tpu_custom_call.1} parent=47 // pred_fallthru
          _
        %s328 = sand.u32 %s28, 1
        %s329 = scalar_lea.sflag [#allocation6], %s328
        %s330 = sand.u32 %s62, 1
        %s331 = smul.addr %s330, 32
        %s332 = scalar_lea.vmem [#allocation5], %s331
        // Predicated region
        $region53: #{tpu_custom_call.1} parent=47 // pred_check
          %p333 = pneg %p75
        $region54: #{tpu_custom_call.1} parent=47 // pred_check_branch
          %335 = sbr.rel (%p333) target = $region56
        $region55: #{tpu_custom_call.1} parent=47 // pred_region
          %336 = dma.done %s329, 512
        $region56: #{tpu_custom_call.1} parent=47 // pred_fallthru
          _
        // Predicated region
        $region57: #{tpu_custom_call.1} parent=47 // pred_check
          %p337 = pneg %p96
        $region58: #{tpu_custom_call.1} parent=47 // pred_check_branch
          %339 = sbr.rel (%p337) target = $region60
        $region59: #{tpu_custom_call.1} parent=47 // pred_region
          %340 = dma.done [#allocation6], 1024
        $region60: #{tpu_custom_call.1} parent=47 // pred_fallthru
          _
        // Predicated region
        $region61: #{tpu_custom_call.1} parent=47 // pred_check
          %p341 = pneg %p138
        $region62: #{tpu_custom_call.1} parent=47 // pred_check_branch
          %343 = sbr.rel (%p341) target = $region64
        $region63: #{tpu_custom_call.1} parent=47 // pred_region
          %344 = dma.done [#allocation9], 1024
        $region64: #{tpu_custom_call.1} parent=47 // pred_fallthru
          _
        // Predicated region
        $region65: #{tpu_custom_call.1} parent=47 // pred_check
          %p345 = pneg %p159
        $region66: #{tpu_custom_call.1} parent=47 // pred_check_branch
          %347 = sbr.rel (%p345) target = $region68
        $region67: #{tpu_custom_call.1} parent=47 // pred_region
          %348 = dma.done [#allocation9], 1024
        $region68: #{tpu_custom_call.1} parent=47 // pred_fallthru
          _
        %s349 = sand.u32 %s36, 1
        %s350 = scalar_lea.sflag [#allocation3], %s349
        %s351 = sand.u32 %s36, 1
        %s352 = smul.addr %s351, 32
        %s353 = scalar_lea.vmem [#allocation2], %s352
        %p354 = pneg %p49
        %p355 = pneg %p46
        %s356 = sand.u32 %s28, 1
        %s357 = scalar_lea.sflag [#allocation6], %s356
        %s358 = sand.u32 %s62, 1
        %s359 = smul.addr %s358, 32
        %s360 = scalar_lea.vmem [#allocation5], %s359
        %p361 = pneg %p75
        %p362 = pneg %p72
        %p363 = pneg %p96
        %p364 = pneg %p93
        %p365 = pneg %p117
        %p366 = pneg %p114
        %p367 = pneg %p138
        %p368 = pneg %p135
        %p369 = pneg %p159
        %p370 = pneg %p156
        %p371 = pneg %p180
        %p372 = pneg %p177
        %p373 = pneg %p206
        %p374 = pneg %p203
        %s375 = sand.u32 %s193, 1
        %s376 = scalar_lea.sflag [#allocation4], %s375
        %s377 = sand.u32 %s193, 1
        %s378 = smul.addr %s377, 64
        %s379 = scalar_lea.vmem [#allocation11], %s378
        %s380 = smul.u32 8, %s28
        %s381 = smul.u32 8, %s28
        %s382 = smul.u32 8, %s28
        %v384 = vld [vmem:[%s323] sm:$0xf]
        %v385 = vld [vmem:[%s323 + $0x4] sm:$0xf]
        %v386 = vld [vmem:[%s323 + $0x8] sm:$0xf]
        %v387 = vld [vmem:[%s323 + $0xc] sm:$0xf]
        %v388 = vld [vmem:[%s323 + $0x10] sm:$0xf]
        %v389 = vld [vmem:[%s323 + $0x14] sm:$0xf]
        %v390 = vld [vmem:[%s323 + $0x18] sm:$0xf]
        %v391 = vld [vmem:[%s323 + $0x1c] sm:$0xf]
        %v392 = vld [vmem:[#allocation7] sm:$0xf]
        %v393 = vld [vmem:[#allocation7 + $0x4] sm:$0xf]
        %v394 = vld [vmem:[#allocation7 + $0x8] sm:$0xf]
        %v395 = vld [vmem:[#allocation7 + $0xc] sm:$0xf]
        %v396 = vld [vmem:[#allocation7 + $0x10] sm:$0xf]
        %v397 = vld [vmem:[#allocation7 + $0x14] sm:$0xf]
        %v398 = vld [vmem:[#allocation7 + $0x18] sm:$0xf]
        %v399 = vld [vmem:[#allocation7 + $0x1c] sm:$0xf]
        %v400 = vld [vmem:[#allocation7 + $0x20] sm:$0xf]
        %v401 = vld [vmem:[#allocation7 + $0x24] sm:$0xf]
        %v402 = vld [vmem:[#allocation7 + $0x28] sm:$0xf]
        %v403 = vld [vmem:[#allocation7 + $0x2c] sm:$0xf]
        %v404 = vld [vmem:[#allocation7 + $0x30] sm:$0xf]
        %v405 = vld [vmem:[#allocation7 + $0x34] sm:$0xf]
        %v406 = vld [vmem:[#allocation7 + $0x38] sm:$0xf]
        %v407 = vld [vmem:[#allocation7 + $0x3c] sm:$0xf]
        %v408 = vld [vmem:[%s3] sm:$0x1]
        %v410 = vlaneseq
        %v411 = vshrl.u32 %v410, 7
        %v412 = vsub.s32 0, %v411
        %v413 = vrot.slane %v408, %v412
        %v423 = vunpack.c.l.b16 %v384
        %v424 = vunpack.c.l.b16 %v385
        %v425 = vunpack.c.l.b16 %v386
        %v426 = vunpack.c.l.b16 %v387
        %v427 = vunpack.c.l.b16 %v388
        %v428 = vunpack.c.l.b16 %v389
        %v429 = vunpack.c.l.b16 %v390
        %v430 = vunpack.c.l.b16 %v391
        %v431 = vpack.c.b16 %v424, %v423
        %v432 = vpack.c.b16 %v426, %v425
        %v433 = vpack.c.b16 %v428, %v427
        %v434 = vpack.c.b16 %v430, %v429
        %v455 = vunpack.c.l.b16 %v392
        %v456 = vunpack.c.l.b16 %v393
        %v457 = vunpack.c.l.b16 %v394
        %v458 = vunpack.c.l.b16 %v395
        %v459 = vunpack.c.l.b16 %v396
        %v460 = vunpack.c.l.b16 %v397
        %v461 = vunpack.c.l.b16 %v398
        %v462 = vunpack.c.l.b16 %v399
        %v463 = vunpack.c.l.b16 %v400
        %v464 = vunpack.c.l.b16 %v401
        %v465 = vunpack.c.l.b16 %v402
        %v466 = vunpack.c.l.b16 %v403
        %v467 = vunpack.c.l.b16 %v404
        %v468 = vunpack.c.l.b16 %v405
        %v469 = vunpack.c.l.b16 %v406
        %v470 = vunpack.c.l.b16 %v407
        %v471 = vpack.c.b16 %v456, %v455
        %v472 = vpack.c.b16 %v458, %v457
        %v473 = vpack.c.b16 %v460, %v459
        %v474 = vpack.c.b16 %v462, %v461
        %v475 = vpack.c.b16 %v464, %v463
        %v476 = vpack.c.b16 %v466, %v465
        %v477 = vpack.c.b16 %v468, %v467
        %v478 = vpack.c.b16 %v470, %v469
        %487 = vmatprep.subr.bf16.mxu0 0
        %488 = vmatpush1.bf16.msra.mxu0 %v471
        %489 = vmatprep.subr.bf16.mxu0 0
        %490 = vmatpush1.bf16.msra.mxu0 %v472
        %491 = vmatprep.subr.bf16.mxu0 0
        %492 = vmatpush1.bf16.msra.mxu0 %v473
        %493 = vmatprep.subr.bf16.mxu0 0
        %494 = vmatpush1.bf16.msra.mxu0 %v474
        %495 = vmatprep.subr.bf16.mxu0 0
        %496 = vmatpush1.bf16.msra.mxu0 %v475
        %497 = vmatprep.subr.bf16.mxu0 0
        %498 = vmatpush1.bf16.msra.mxu0 %v476
        %499 = vmatprep.subr.bf16.mxu0 0
        %500 = vmatpush1.bf16.msra.mxu0 %v477
        %501 = vmatprep.subr.bf16.mxu0 0
        %502 = vmatpush1.bf16.msra.mxu0 %v478
        %503 = vmatprep.subr.bf16.mxu0 0
        %504 = vmatpush1.bf16.msra.mxu0 0
        %505 = vmatprep.subr.bf16.mxu0 0
        %506 = vmatpush1.bf16.msra.mxu0 0
        %507 = vmatprep.subr.bf16.mxu0 0
        %508 = vmatpush1.bf16.msra.mxu0 0
        %509 = vmatprep.subr.bf16.mxu0 0
        %510 = vmatpush1.bf16.msra.mxu0 0
        %511 = vmatprep.subr.bf16.mxu0 0
        %512 = vmatpush1.bf16.msra.mxu0 0
        %513 = vmatprep.subr.bf16.mxu0 0
        %514 = vmatpush1.bf16.msra.mxu0 0
        %515 = vmatprep.subr.bf16.mxu0 0
        %516 = vmatpush1.bf16.msra.mxu0 0
        %517 = vmatprep.subr.bf16.mxu0 0
        %518 = vmatpush1.bf16.msra.mxu0 0
        %519 = vmatprep.mubr.bf16.mxu0 0
        %520 = vmatmul.mubr.bf16.gmra.mrb[0].mxu0 %v431
        %v521 = vpop.f32.mrb[0].mxu0
        %v522 = vadd.f32 %v413, %v521
        %v523 = vpop.f32.mrb[0].mxu0
        %v524 = vpop.f32.mrb[0].mxu0
        %v525 = vadd.f32 %v413, %v524
        %v526 = vpop.f32.mrb[0].mxu0
        %527 = vmatprep.mubr.bf16.mxu0 0
        %528 = vmatmul.mubr.bf16.gmra.mrb[0].mxu0 %v432
        %v529 = vpop.f32.mrb[0].mxu0
        %v530 = vadd.f32 %v413, %v529
        %v531 = vpop.f32.mrb[0].mxu0
        %v532 = vpop.f32.mrb[0].mxu0
        %v533 = vadd.f32 %v413, %v532
        %v534 = vpop.f32.mrb[0].mxu0
        %535 = vmatprep.mubr.bf16.mxu0 0
        %536 = vmatmul.mubr.bf16.gmra.mrb[0].mxu0 %v433
        %v537 = vpop.f32.mrb[0].mxu0
        %v538 = vadd.f32 %v413, %v537
        %v539 = vpop.f32.mrb[0].mxu0
        %v540 = vpop.f32.mrb[0].mxu0
        %v541 = vadd.f32 %v413, %v540
        %v542 = vpop.f32.mrb[0].mxu0
        %543 = vmatprep.mubr.bf16.mxu0 0
        %544 = vmatmul.mubr.bf16.gmra.mrb[0].mxu0 %v434
        %v545 = vpop.f32.mrb[0].mxu0
        %v546 = vadd.f32 %v413, %v545
        %v547 = vpop.f32.mrb[0].mxu0
        %v548 = vpop.f32.mrb[0].mxu0
        %v549 = vadd.f32 %v413, %v548
        %v550 = vpop.f32.mrb[0].mxu0
        %551 = vdwg.mxu0
        %v552 = vmax.f32 %v522, 0.0
        %v553 = vmax.f32 %v525, 0.0
        %v554 = vmax.f32 %v530, 0.0
        %v555 = vmax.f32 %v533, 0.0
        %v556 = vmax.f32 %v538, 0.0
        %v557 = vmax.f32 %v541, 0.0
        %v558 = vmax.f32 %v546, 0.0
        %v559 = vmax.f32 %v549, 0.0
        %v560 = vpack.c.bf16 %v553, %v552
        %v561 = vpack.c.bf16 %v555, %v554
        %v562 = vpack.c.bf16 %v557, %v556
        %v563 = vpack.c.bf16 %v559, %v558
        %v564 = vld [vmem:[#allocation8] sm:$0xf]
        %v565 = vld [vmem:[#allocation8 + $0x4] sm:$0xf]
        %v566 = vld [vmem:[#allocation8 + $0x8] sm:$0xf]
        %v567 = vld [vmem:[#allocation8 + $0xc] sm:$0xf]
        %v568 = vld [vmem:[#allocation8 + $0x10] sm:$0xf]
        %v569 = vld [vmem:[#allocation8 + $0x14] sm:$0xf]
        %v570 = vld [vmem:[#allocation8 + $0x18] sm:$0xf]
        %v571 = vld [vmem:[#allocation8 + $0x1c] sm:$0xf]
        %v572 = vld [vmem:[#allocation8 + $0x20] sm:$0xf]
        %v573 = vld [vmem:[#allocation8 + $0x24] sm:$0xf]
        %v574 = vld [vmem:[#allocation8 + $0x28] sm:$0xf]
        %v575 = vld [vmem:[#allocation8 + $0x2c] sm:$0xf]
        %v576 = vld [vmem:[#allocation8 + $0x30] sm:$0xf]
        %v577 = vld [vmem:[#allocation8 + $0x34] sm:$0xf]
        %v578 = vld [vmem:[#allocation8 + $0x38] sm:$0xf]
        %v579 = vld [vmem:[#allocation8 + $0x3c] sm:$0xf]
        %v580 = vld [vmem:[%s332] sm:$0xf]
        %v581 = vld [vmem:[%s332 + $0x4] sm:$0xf]
        %v582 = vld [vmem:[%s332 + $0x8] sm:$0xf]
        %v583 = vld [vmem:[%s332 + $0xc] sm:$0xf]
        %v584 = vld [vmem:[%s332 + $0x10] sm:$0xf]
        %v585 = vld [vmem:[%s332 + $0x14] sm:$0xf]
        %v586 = vld [vmem:[%s332 + $0x18] sm:$0xf]
        %v587 = vld [vmem:[%s332 + $0x1c] sm:$0xf]
        %v588 = vld [vmem:[#allocation10] sm:$0xf]
        %v589 = vld [vmem:[#allocation10 + $0x4] sm:$0xf]
        %v590 = vld [vmem:[#allocation10 + $0x8] sm:$0xf]
        %v591 = vld [vmem:[#allocation10 + $0xc] sm:$0xf]
        %v592 = vld [vmem:[#allocation10 + $0x10] sm:$0xf]
        %v593 = vld [vmem:[#allocation10 + $0x14] sm:$0xf]
        %v594 = vld [vmem:[#allocation10 + $0x18] sm:$0xf]
        %v595 = vld [vmem:[#allocation10 + $0x1c] sm:$0xf]
        %v596 = vld [vmem:[#allocation10 + $0x20] sm:$0xf]
        %v597 = vld [vmem:[#allocation10 + $0x24] sm:$0xf]
        %v598 = vld [vmem:[#allocation10 + $0x28] sm:$0xf]
        %v599 = vld [vmem:[#allocation10 + $0x2c] sm:$0xf]
        %v600 = vld [vmem:[#allocation10 + $0x30] sm:$0xf]
        %v601 = vld [vmem:[#allocation10 + $0x34] sm:$0xf]
        %v602 = vld [vmem:[#allocation10 + $0x38] sm:$0xf]
        %v603 = vld [vmem:[#allocation10 + $0x3c] sm:$0xf]
        %v612 = vunpack.c.l.b16 %v580
        %v613 = vunpack.c.l.b16 %v581
        %v614 = vunpack.c.l.b16 %v582
        %v615 = vunpack.c.l.b16 %v583
        %v616 = vunpack.c.l.b16 %v584
        %v617 = vunpack.c.l.b16 %v585
        %v618 = vunpack.c.l.b16 %v586
        %v619 = vunpack.c.l.b16 %v587
        %v620 = vpack.c.b16 %v613, %v612
        %v621 = vpack.c.b16 %v615, %v614
        %v622 = vpack.c.b16 %v617, %v616
        %v623 = vpack.c.b16 %v619, %v618
        %v644 = vunpack.c.l.b16 %v588
        %v645 = vunpack.c.l.b16 %v589
        %v646 = vunpack.c.l.b16 %v590
        %v647 = vunpack.c.l.b16 %v591
        %v648 = vunpack.c.l.b16 %v592
        %v649 = vunpack.c.l.b16 %v593
        %v650 = vunpack.c.l.b16 %v594
        %v651 = vunpack.c.l.b16 %v595
        %v652 = vunpack.c.l.b16 %v596
        %v653 = vunpack.c.l.b16 %v597
        %v654 = vunpack.c.l.b16 %v598
        %v655 = vunpack.c.l.b16 %v599
        %v656 = vunpack.c.l.b16 %v600
        %v657 = vunpack.c.l.b16 %v601
        %v658 = vunpack.c.l.b16 %v602
        %v659 = vunpack.c.l.b16 %v603
        %v660 = vpack.c.b16 %v645, %v644
        %v661 = vpack.c.b16 %v647, %v646
        %v662 = vpack.c.b16 %v649, %v648
        %v663 = vpack.c.b16 %v651, %v650
        %v664 = vpack.c.b16 %v653, %v652
        %v665 = vpack.c.b16 %v655, %v654
        %v666 = vpack.c.b16 %v657, %v656
        %v667 = vpack.c.b16 %v659, %v658
        %676 = vmatprep.subr.bf16.mxu0 0
        %677 = vmatpush1.bf16.msra.mxu0 %v660
        %678 = vmatprep.subr.bf16.mxu0 0
        %679 = vmatpush1.bf16.msra.mxu0 %v661
        %680 = vmatprep.subr.bf16.mxu0 0
        %681 = vmatpush1.bf16.msra.mxu0 %v662
        %682 = vmatprep.subr.bf16.mxu0 0
        %683 = vmatpush1.bf16.msra.mxu0 %v663
        %684 = vmatprep.subr.bf16.mxu0 0
        %685 = vmatpush1.bf16.msra.mxu0 %v664
        %686 = vmatprep.subr.bf16.mxu0 0
        %687 = vmatpush1.bf16.msra.mxu0 %v665
        %688 = vmatprep.subr.bf16.mxu0 0
        %689 = vmatpush1.bf16.msra.mxu0 %v666
        %690 = vmatprep.subr.bf16.mxu0 0
        %691 = vmatpush1.bf16.msra.mxu0 %v667
        %692 = vmatprep.subr.bf16.mxu0 0
        %693 = vmatpush1.bf16.msra.mxu0 0
        %694 = vmatprep.subr.bf16.mxu0 0
        %695 = vmatpush1.bf16.msra.mxu0 0
        %696 = vmatprep.subr.bf16.mxu0 0
        %697 = vmatpush1.bf16.msra.mxu0 0
        %698 = vmatprep.subr.bf16.mxu0 0
        %699 = vmatpush1.bf16.msra.mxu0 0
        %700 = vmatprep.subr.bf16.mxu0 0
        %701 = vmatpush1.bf16.msra.mxu0 0
        %702 = vmatprep.subr.bf16.mxu0 0
        %703 = vmatpush1.bf16.msra.mxu0 0
        %704 = vmatprep.subr.bf16.mxu0 0
        %705 = vmatpush1.bf16.msra.mxu0 0
        %706 = vmatprep.subr.bf16.mxu0 0
        %707 = vmatpush1.bf16.msra.mxu0 0
        %708 = vmatprep.mubr.bf16.mxu0 0
        %709 = vmatmul.mubr.bf16.gmra.mrb[0].mxu0 %v620
        %v710 = vpop.f32.mrb[0].mxu0
        %v711 = vadd.f32 0.0, %v710
        %v712 = vpop.f32.mrb[0].mxu0
        %v713 = vpop.f32.mrb[0].mxu0
        %v714 = vadd.f32 0.0, %v713
        %v715 = vpop.f32.mrb[0].mxu0
        %716 = vmatprep.mubr.bf16.mxu0 0
        %717 = vmatmul.mubr.bf16.gmra.mrb[0].mxu0 %v621
        %v718 = vpop.f32.mrb[0].mxu0
        %v719 = vadd.f32 0.0, %v718
        %v720 = vpop.f32.mrb[0].mxu0
        %v721 = vpop.f32.mrb[0].mxu0
        %v722 = vadd.f32 0.0, %v721
        %v723 = vpop.f32.mrb[0].mxu0
        %724 = vmatprep.mubr.bf16.mxu0 0
        %725 = vmatmul.mubr.bf16.gmra.mrb[0].mxu0 %v622
        %v726 = vpop.f32.mrb[0].mxu0
        %v727 = vadd.f32 0.0, %v726
        %v728 = vpop.f32.mrb[0].mxu0
        %v729 = vpop.f32.mrb[0].mxu0
        %v730 = vadd.f32 0.0, %v729
        %v731 = vpop.f32.mrb[0].mxu0
        %732 = vmatprep.mubr.bf16.mxu0 0
        %733 = vmatmul.mubr.bf16.gmra.mrb[0].mxu0 %v623
        %v734 = vpop.f32.mrb[0].mxu0
        %v735 = vadd.f32 0.0, %v734
        %v736 = vpop.f32.mrb[0].mxu0
        %v737 = vpop.f32.mrb[0].mxu0
        %v738 = vadd.f32 0.0, %v737
        %v739 = vpop.f32.mrb[0].mxu0
        %740 = vdwg.mxu0
        %v757 = vunpack.c.l.b16 %v564
        %v758 = vunpack.c.l.b16 %v565
        %v759 = vunpack.c.l.b16 %v566
        %v760 = vunpack.c.l.b16 %v567
        %v761 = vunpack.c.l.b16 %v568
        %v762 = vunpack.c.l.b16 %v569
        %v763 = vunpack.c.l.b16 %v570
        %v764 = vunpack.c.l.b16 %v571
        %v765 = vunpack.c.l.b16 %v572
        %v766 = vunpack.c.l.b16 %v573
        %v767 = vunpack.c.l.b16 %v574
        %v768 = vunpack.c.l.b16 %v575
        %v769 = vunpack.c.l.b16 %v576
        %v770 = vunpack.c.l.b16 %v577
        %v771 = vunpack.c.l.b16 %v578
        %v772 = vunpack.c.l.b16 %v579
        %v773 = vpack.c.b16 %v758, %v757
        %v774 = vpack.c.b16 %v760, %v759
        %v775 = vpack.c.b16 %v762, %v761
        %v776 = vpack.c.b16 %v764, %v763
        %v777 = vpack.c.b16 %v766, %v765
        %v778 = vpack.c.b16 %v768, %v767
        %v779 = vpack.c.b16 %v770, %v769
        %v780 = vpack.c.b16 %v772, %v771
        %789 = vmatprep.subr.bf16.mxu0 0
        %790 = vmatpush1.bf16.msra.mxu0 %v773
        %791 = vmatprep.subr.bf16.mxu0 0
        %792 = vmatpush1.bf16.msra.mxu0 %v774
        %793 = vmatprep.subr.bf16.mxu0 0
        %794 = vmatpush1.bf16.msra.mxu0 %v775
        %795 = vmatprep.subr.bf16.mxu0 0
        %796 = vmatpush1.bf16.msra.mxu0 %v776
        %797 = vmatprep.subr.bf16.mxu0 0
        %798 = vmatpush1.bf16.msra.mxu0 %v777
        %799 = vmatprep.subr.bf16.mxu0 0
        %800 = vmatpush1.bf16.msra.mxu0 %v778
        %801 = vmatprep.subr.bf16.mxu0 0
        %802 = vmatpush1.bf16.msra.mxu0 %v779
        %803 = vmatprep.subr.bf16.mxu0 0
        %804 = vmatpush1.bf16.msra.mxu0 %v780
        %805 = vmatprep.subr.bf16.mxu0 0
        %806 = vmatpush1.bf16.msra.mxu0 0
        %807 = vmatprep.subr.bf16.mxu0 0
        %808 = vmatpush1.bf16.msra.mxu0 0
        %809 = vmatprep.subr.bf16.mxu0 0
        %810 = vmatpush1.bf16.msra.mxu0 0
        %811 = vmatprep.subr.bf16.mxu0 0
        %812 = vmatpush1.bf16.msra.mxu0 0
        %813 = vmatprep.subr.bf16.mxu0 0
        %814 = vmatpush1.bf16.msra.mxu0 0
        %815 = vmatprep.subr.bf16.mxu0 0
        %816 = vmatpush1.bf16.msra.mxu0 0
        %817 = vmatprep.subr.bf16.mxu0 0
        %818 = vmatpush1.bf16.msra.mxu0 0
        %819 = vmatprep.subr.bf16.mxu0 0
        %820 = vmatpush1.bf16.msra.mxu0 0
        %821 = vmatprep.mubr.bf16.mxu0 0
        %822 = vmatmul.mubr.bf16.gmra.mrb[0].mxu0 %v560
        %v823 = vpop.f32.mrb[0].mxu0
        %v824 = vadd.f32 %v711, %v823
        %v825 = vpop.f32.mrb[0].mxu0
        %v826 = vpop.f32.mrb[0].mxu0
        %v827 = vadd.f32 %v714, %v826
        %v828 = vpop.f32.mrb[0].mxu0
        %829 = vmatprep.mubr.bf16.mxu0 0
        %830 = vmatmul.mubr.bf16.gmra.mrb[0].mxu0 %v561
        %v831 = vpop.f32.mrb[0].mxu0
        %v832 = vadd.f32 %v719, %v831
        %v833 = vpop.f32.mrb[0].mxu0
        %v834 = vpop.f32.mrb[0].mxu0
        %v835 = vadd.f32 %v722, %v834
        %v836 = vpop.f32.mrb[0].mxu0
        %837 = vmatprep.mubr.bf16.mxu0 0
        %838 = vmatmul.mubr.bf16.gmra.mrb[0].mxu0 %v562
        %v839 = vpop.f32.mrb[0].mxu0
        %v840 = vadd.f32 %v727, %v839
        %v841 = vpop.f32.mrb[0].mxu0
        %v842 = vpop.f32.mrb[0].mxu0
        %v843 = vadd.f32 %v730, %v842
        %v844 = vpop.f32.mrb[0].mxu0
        %845 = vmatprep.mubr.bf16.mxu0 0
        %846 = vmatmul.mubr.bf16.gmra.mrb[0].mxu0 %v563
        %v847 = vpop.f32.mrb[0].mxu0
        %v848 = vadd.f32 %v735, %v847
        %v849 = vpop.f32.mrb[0].mxu0
        %v850 = vpop.f32.mrb[0].mxu0
        %v851 = vadd.f32 %v738, %v850
        %v852 = vpop.f32.mrb[0].mxu0
        %853 = vdwg.mxu0
        %v854 = vld [vmem:[%s6] sm:$0x1]
        %v856 = vlaneseq
        %v857 = vshrl.u32 %v856, 7
        %v858 = vsub.s32 0, %v857
        %v859 = vrot.slane %v854, %v858
        %v861 = vadd.f32 %v824, %v859
        %v862 = vadd.f32 %v827, %v859
        %v863 = vadd.f32 %v832, %v859
        %v864 = vadd.f32 %v835, %v859
        %v865 = vadd.f32 %v840, %v859
        %v866 = vadd.f32 %v843, %v859
        %v867 = vadd.f32 %v848, %v859
        %v868 = vadd.f32 %v851, %v859
        %v869 = vmax.f32 %v861, 0.0
        %v870 = vmax.f32 %v862, 0.0
        %v871 = vmax.f32 %v863, 0.0
        %v872 = vmax.f32 %v864, 0.0
        %v873 = vmax.f32 %v865, 0.0
        %v874 = vmax.f32 %v866, 0.0
        %v875 = vmax.f32 %v867, 0.0
        %v876 = vmax.f32 %v868, 0.0
        %877 = vst [vmem:[%s379] sm:$0xff] %v869
        %878 = vst [vmem:[%s379 + $0x8] sm:$0xff] %v870
        %879 = vst [vmem:[%s379 + $0x10] sm:$0xff] %v871
        %880 = vst [vmem:[%s379 + $0x18] sm:$0xff] %v872
        %881 = vst [vmem:[%s379 + $0x20] sm:$0xff] %v873
        %882 = vst [vmem:[%s379 + $0x28] sm:$0xff] %v874
        %883 = vst [vmem:[%s379 + $0x30] sm:$0xff] %v875
        %884 = vst [vmem:[%s379 + $0x38] sm:$0xff] %v876
        %s885 = sand.u32 %s193, 1
        %s886 = scalar_lea.sflag [#allocation4], %s885
        %s887 = sand.u32 %s193, 1
        %s888 = smul.addr %s887, 64
        %s889 = scalar_lea.vmem [#allocation11], %s888
        // Predicated region
        $region69: #{tpu_custom_call.1} parent=47 // pred_check
          %p890 = pneg %p203
        $region70: #{tpu_custom_call.1} parent=47 // pred_check_branch
          %892 = sbr.rel (%p890) target = $region72
        $region71: #{tpu_custom_call.1} parent=47 // pred_region
          %s893 = smul.u32 8, %s28
          %s895 = ssub.s32 1024, 1024
          %896 = vsyncadd %s886, %s895
          %s897 = smul.addr %s893, 128
          %s898 = scalar_lea.hbm %s7, %s897
          %s899 = sshll.u32 %s889, 4
          %s900 = int_to_ptr.vmem [resolvable:$true] %s899
          %905 = dma.vmem_to_hbm [thread:$0]  %s900, 1024, %s898, %s886, 128, 128, 8
        $region72: #{tpu_custom_call.1} parent=47 // pred_fallthru
          _
      $region48: #{tpu_custom_call.1} parent=5 // pred_fallthru
        _
      %p906 = scmp.le.s32.totalorder 2, %s23
      // Predicated region
      $region73: #{tpu_custom_call.1} parent=5 // pred_check
        %p907 = pneg %p906
      $region74: #{tpu_custom_call.1} parent=5 // pred_check_branch
        %909 = sbr.rel (%p907) target = $region76
      $region75: #{tpu_custom_call.1} parent=5 // pred_region
        %s910 = ssub.s32 %s23, 2
        // Predicated region
        $region77: #{tpu_custom_call.1} parent=75 // pred_check
          %p911 = pneg %p209
        $region78: #{tpu_custom_call.1} parent=75 // pred_check_branch
          %913 = sbr.rel (%p911) target = $region80
        $region79: #{tpu_custom_call.1} parent=75 // pred_region
          %s914 = sand.u32 %s194, 1
          %s915 = scalar_lea.sflag [#allocation4], %s914
          %s916 = sand.u32 %s194, 1
          %s917 = smul.addr %s916, 64
          %s918 = scalar_lea.vmem [#allocation11], %s917
          %919 = dma.done %s915, 1024
        $region80: #{tpu_custom_call.1} parent=75 // pred_fallthru
          _
      $region76: #{tpu_custom_call.1} parent=5 // pred_fallthru
        _
    $region6: #{tpu_custom_call.1} parent=1 // loop_footer
      %s27 = sadd.s32 1, %s23
    $region7: #{tpu_custom_call.1} parent=1 // loop_footer_branch
      %22 = sbr.rel target = $region3
    $region8: #{tpu_custom_call.1} parent=1 // loop_exit
      _
    %920 = vsyncpa [#allocation3], 1
    %s921 = scalar_lea.sflag [#allocation3], 1
    %922 = vsyncpa %s921, 1
    %923 = vsyncpa [#allocation6], 1
    %s924 = scalar_lea.sflag [#allocation6], 1
    %925 = vsyncpa %s924, 1
    %926 = vsyncpa [#allocation9], 1
    %927 = vsyncpa [#allocation4], 1
    %s928 = scalar_lea.sflag [#allocation4], 1
    %929 = vsyncpa %s928, 1

// kernel: tpu_custom_call.1
$region0: #{tpu_custom_call.1}
  #allocation0 [shape = 'u32[]', space=smem, size = 0x4, offset = 0x4, fixed_abs, tag = 'smem constant byte address 0x4 - core index']
  #allocation1 [shape = 'u32[144,128]{1,0:T(1,128)}', space=vmem, size = 0x12000, scoped, tag = 'internal scratch']
  %s0 = inlined_call_operand.hbm [shape: bf16[128,128], index: 0, kind: input, shape index: {}]
  %s1 = inlined_call_operand.hbm [shape: bf16[128,128], index: 1, kind: input, shape index: {}]
  %s2 = inlined_call_operand.hbm [shape: bf16[128,128], index: 2, kind: input, shape index: {}]
  %s3 = inlined_call_operand.vmem [shape: f32[1,128], index: 3, kind: input, shape index: {}]
  %s4 = inlined_call_operand.hbm [shape: bf16[128,128], index: 4, kind: input, shape index: {}]
  %s5 = inlined_call_operand.hbm [shape: bf16[128,128], index: 5, kind: input, shape index: {}]
  %s6 = inlined_call_operand.vmem [shape: f32[1,128], index: 6, kind: input, shape index: {}]
  %s7 = inlined_call_operand.hbm [shape: f32[128,128], index: 7, kind: output, shape index: {}]
  %s8 = sld [smem:[#allocation0]]
  $region81: #{tpu_custom_call.1} parent=0
    _
  %s10 = ssub.s32 1, %s8
  %s11 = scalar_select 0, %s10, %s8
  $region1: #{tpu_custom_call.1} parent=0
    #allocation2 [shape = 'u8[32768]{0}', space=vmem, size = 0x8000, scoped, tag = 'input window, operand 0']
    #allocation3 [shape = 's32[2]{0}', space=sflag, size = 0x8, scoped, tag = 'scoped memory for tpu_custom_call.1']
    #allocation4 [shape = 's32[2]{0}', space=sflag, size = 0x8, scoped, tag = 'scoped memory for tpu_custom_call.1']
    #allocation5 [shape = 'u8[32768]{0}', space=vmem, size = 0x8000, scoped, tag = 'input window, operand 1']
    #allocation6 [shape = 's32[2]{0}', space=sflag, size = 0x8, scoped, tag = 'scoped memory for tpu_custom_call.1']
    #allocation7 [shape = 'u8[32768]{0}', space=vmem, size = 0x8000, scoped, tag = 'input window, operand 2, single buffered']
    #allocation8 [shape = 'u8[32768]{0}', space=vmem, size = 0x8000, scoped, tag = 'input window, operand 4, single buffered']
    #allocation9 [shape = 's32[1]{0}', space=sflag, size = 0x4, scoped, tag = 'scoped memory for tpu_custom_call.1']
    #allocation10 [shape = 'u8[32768]{0}', space=vmem, size = 0x8000, scoped, tag = 'input window, operand 5, single buffered']
    #allocation11 [shape = 'u8[65536]{0}', space=vmem, size = 0x10000, scoped, tag = 'output window, operand 0']
    %12 = vsyncpa [#allocation3], 0
    %s13 = scalar_lea.sflag [#allocation3], 1
    %14 = vsyncpa %s13, 0
    %15 = vsyncpa [#allocation6], 0
    %s16 = scalar_lea.sflag [#allocation6], 1
    %17 = vsyncpa %s16, 0
    %18 = vsyncpa [#allocation9], 0
    %19 = vsyncpa [#allocation4], 0
    %s20 = scalar_lea.sflag [#allocation4], 1
    %21 = vsyncpa %s20, 0
    loop: start=0, step=1, limit=4
    $region2: #{tpu_custom_call.1} parent=1 // loop_pre_header
      _
    $region3: #{tpu_custom_call.1} parent=1 // loop_header
      %s23 = sphi 0, %s27
      %p24 = scmp.ge.s32.totalorder %s23, 4
      %s33 = sphi 0, %s35
      %s36 = sphi 0, %s33
      %s37 = sphi 0, %s36
      %s53 = sphi 0, %s37
      %s59 = sphi 0, %s61
      %s62 = sphi 0, %s59
      %s63 = sphi 0, %s62
      %s79 = sphi 0, %s63
      %s83 = sphi 0, %s83
      %s85 = sphi 0, %s83
      %s86 = sphi 0, %s85
      %s100 = sphi 0, %s86
      %s104 = sphi 0, %s104
      %s106 = sphi 0, %s104
      %s107 = sphi 0, %s106
      %s121 = sphi 0, %s107
      %s125 = sphi 0, %s125
      %s127 = sphi 0, %s125
      %s128 = sphi 0, %s127
      %s142 = sphi 0, %s128
      %s146 = sphi 0, %s146
      %s148 = sphi 0, %s146
      %s149 = sphi 0, %s148
      %s163 = sphi 0, %s149
      %s167 = sphi 0, %s167
      %s169 = sphi 0, %s167
      %s170 = sphi 0, %s169
      %s184 = sphi 0, %s170
      %s190 = sphi 0, %s192
      %s193 = sphi 0, %s190
      %s194 = sphi 0, %s193
      %s210 = sphi 0, %s194
    $region4: #{tpu_custom_call.1} parent=1 // loop_header_branch
      %26 = sbr.rel (%p24) target = $region8
    $region5: #{tpu_custom_call.1} parent=1 // loop_body
      %s28 = ssub.s32 %s23, 1
      %s29 = ssub.s32 %s23, 2
      %s30 = sadd.s32 %s23, 1
      %s31 = ssub.s32 %s23, %s30
      %p32 = scmp.eq.s32.totalorder %s31, 0
      %s34 = sadd.s32 %s33, 1
      %s35 = scalar_select %p32, %s33, %s34
      %p38 = pneg %p32
      %p39 = scmp.eq.s32.totalorder %s23, 1
      %p40 = por %p38, %p39
      %p41 = scmp.ne.s32.totalorder %s33, %s36
      %p42 = scmp.eq.s32.totalorder %s23, 0
      %p43 = por %p41, %p42
      %p44 = scmp.ne.s32.totalorder %s33, %s36
      %p45 = scmp.eq.s32.totalorder %s28, 1
      %p46 = por %p44, %p45
      %p47 = scmp.ne.s32.totalorder %s36, %s37
      %p48 = scmp.eq.s32.totalorder %s28, 0
      %p49 = por %p47, %p48
      %p50 = scmp.ne.s32.totalorder %s36, %s37
      %p51 = scmp.eq.s32.totalorder %s29, 1
      %p52 = por %p50, %p51
      %p54 = scmp.ne.s32.totalorder %s37, %s53
      %p55 = scmp.eq.s32.totalorder %s29, 0
      %p56 = por %p54, %p55
      %s57 = ssub.s32 %s23, %s30
      %p58 = scmp.eq.s32.totalorder %s57, 0
      %s60 = sadd.s32 %s59, 1
      %s61 = scalar_select %p58, %s59, %s60
      %p64 = pneg %p58
      %p65 = scmp.eq.s32.totalorder %s23, 1
      %p66 = por %p64, %p65
      %p67 = scmp.ne.s32.totalorder %s59, %s62
      %p68 = scmp.eq.s32.totalorder %s23, 0
      %p69 = por %p67, %p68
      %p70 = scmp.ne.s32.totalorder %s59, %s62
      %p71 = scmp.eq.s32.totalorder %s28, 1
      %p72 = por %p70, %p71
      %p73 = scmp.ne.s32.totalorder %s62, %s63
      %p74 = scmp.eq.s32.totalorder %s28, 0
      %p75 = por %p73, %p74
      %p76 = scmp.ne.s32.totalorder %s62, %s63
      %p77 = scmp.eq.s32.totalorder %s29, 1
      %p78 = por %p76, %p77
      %p80 = scmp.ne.s32.totalorder %s63, %s79
      %p81 = scmp.eq.s32.totalorder %s29, 0
      %p82 = por %p80, %p81
      %s84 = sadd.s32 %s83, 1
      %p87 = scmp.eq.s32.totalorder %s23, 1
      %p88 = scmp.ne.s32.totalorder %s83, %s85
      %p89 = scmp.eq.s32.totalorder %s23, 0
      %p90 = por %p88, %p89
      %p91 = scmp.ne.s32.totalorder %s83, %s85
      %p92 = scmp.eq.s32.totalorder %s28, 1
      %p93 = por %p91, %p92
      %p94 = scmp.ne.s32.totalorder %s85, %s86
      %p95 = scmp.eq.s32.totalorder %s28, 0
      %p96 = por %p94, %p95
      %p97 = scmp.ne.s32.totalorder %s85, %s86
      %p98 = scmp.eq.s32.totalorder %s29, 1
      %p99 = por %p97, %p98
      %p101 = scmp.ne.s32.totalorder %s86, %s100
      %p102 = scmp.eq.s32.totalorder %s29, 0
      %p103 = por %p101, %p102
      %s105 = sadd.s32 %s104, 1
      %p108 = scmp.eq.s32.totalorder %s23, 1
      %p109 = scmp.ne.s32.totalorder %s104, %s106
      %p110 = scmp.eq.s32.totalorder %s23, 0
      %p111 = por %p109, %p110
      %p112 = scmp.ne.s32.totalorder %s104, %s106
      %p113 = scmp.eq.s32.totalorder %s28, 1
      %p114 = por %p112, %p113
      %p115 = scmp.ne.s32.totalorder %s106, %s107
      %p116 = scmp.eq.s32.totalorder %s28, 0
      %p117 = por %p115, %p116
      %p118 = scmp.ne.s32.totalorder %s106, %s107
      %p119 = scmp.eq.s32.totalorder %s29, 1
      %p120 = por %p118, %p119
      %p122 = scmp.ne.s32.totalorder %s107, %s121
      %p123 = scmp.eq.s32.totalorder %s29, 0
      %p124 = por %p122, %p123
      %s126 = sadd.s32 %s125, 1
      %p129 = scmp.eq.s32.totalorder %s23, 1
      %p130 = scmp.ne.s32.totalorder %s125, %s127
      %p131 = scmp.eq.s32.totalorder %s23, 0
      %p132 = por %p130, %p131
      %p133 = scmp.ne.s32.totalorder %s125, %s127
      %p134 = scmp.eq.s32.totalorder %s28, 1
      %p135 = por %p133, %p134
      %p136 = scmp.ne.s32.totalorder %s127, %s128
      %p137 = scmp.eq.s32.totalorder %s28, 0
      %p138 = por %p136, %p137
      %p139 = scmp.ne.s32.totalorder %s127, %s128
      %p140 = scmp.eq.s32.totalorder %s29, 1
      %p141 = por %p139, %p140
      %p143 = scmp.ne.s32.totalorder %s128, %s142
      %p144 = scmp.eq.s32.totalorder %s29, 0
      %p145 = por %p143, %p144
      %s147 = sadd.s32 %s146, 1
      %p150 = scmp.eq.s32.totalorder %s23, 1
      %p151 = scmp.ne.s32.totalorder %s146, %s148
      %p152 = scmp.eq.s32.totalorder %s23, 0
      %p153 = por %p151, %p152
      %p154 = scmp.ne.s32.totalorder %s146, %s148
      %p155 = scmp.eq.s32.totalorder %s28, 1
      %p156 = por %p154, %p155
      %p157 = scmp.ne.s32.totalorder %s148, %s149
      %p158 = scmp.eq.s32.totalorder %s28, 0
      %p159 = por %p157, %p158
      %p160 = scmp.ne.s32.totalorder %s148, %s149
      %p161 = scmp.eq.s32.totalorder %s29, 1
      %p162 = por %p160, %p161
      %p164 = scmp.ne.s32.totalorder %s149, %s163
      %p165 = scmp.eq.s32.totalorder %s29, 0
      %p166 = por %p164, %p165
      %s168 = sadd.s32 %s167, 1
      %p171 = scmp.eq.s32.totalorder %s23, 1
      %p172 = scmp.ne.s32.totalorder %s167, %s169
      %p173 = scmp.eq.s32.totalorder %s23, 0
      %p174 = por %p172, %p173
      %p175 = scmp.ne.s32.totalorder %s167, %s169
      %p176 = scmp.eq.s32.totalorder %s28, 1
      %p177 = por %p175, %p176
      %p178 = scmp.ne.s32.totalorder %s169, %s170
      %p179 = scmp.eq.s32.totalorder %s28, 0
      %p180 = por %p178, %p179
      %p181 = scmp.ne.s32.totalorder %s169, %s170
      %p182 = scmp.eq.s32.totalorder %s29, 1
      %p183 = por %p181, %p182
      %p185 = scmp.ne.s32.totalorder %s170, %s184
      %p186 = scmp.eq.s32.totalorder %s29, 0
      %p187 = por %p185, %p186
      %s188 = ssub.s32 %s23, %s30
      %p189 = scmp.eq.s32.totalorder %s188, 0
      %s191 = sadd.s32 %s190, 1
      %s192 = scalar_select %p189, %s190, %s191
      %p195 = pneg %p189
      %p196 = scmp.eq.s32.totalorder %s23, 1
      %p197 = por %p195, %p196
      %p198 = scmp.ne.s32.totalorder %s190, %s193
      %p199 = scmp.eq.s32.totalorder %s23, 0
      %p200 = por %p198, %p199
      %p201 = scmp.ne.s32.totalorder %s190, %s193
      %p202 = scmp.eq.s32.totalorder %s28, 1
      %p203 = por %p201, %p202
      %p204 = scmp.ne.s32.totalorder %s193, %s194
      %p205 = scmp.eq.s32.totalorder %s28, 0
      %p206 = por %p204, %p205
      %p207 = scmp.ne.s32.totalorder %s193, %s194
      %p208 = scmp.eq.s32.totalorder %s29, 1
      %p209 = por %p207, %p208
      %p211 = scmp.ne.s32.totalorder %s194, %s210
      %p212 = scmp.eq.s32.totalorder %s29, 0
      %p213 = por %p211, %p212
      %p214 = scmp.le.s32.totalorder 1, %s23
      %p215 = scmp.lt.s32.totalorder %s23, 3
      %p216 = pnand %p214, %p215
      %p217 = pneg %p216
      // Predicated region
      $region9: #{tpu_custom_call.1} parent=5 // pred_check
        _
      $region10: #{tpu_custom_call.1} parent=5 // pred_check_branch
        %219 = sbr.rel (%p216) target = $region12
      $region11: #{tpu_custom_call.1} parent=5 // pred_region
        %s220 = ssub.s32 %s23, 1
        // Predicated region
        $region13: #{tpu_custom_call.1} parent=11 // pred_check
          %p221 = pneg %p96
        $region14: #{tpu_custom_call.1} parent=11 // pred_check_branch
          %223 = sbr.rel (%p221) target = $region16
        $region15: #{tpu_custom_call.1} parent=11 // pred_region
          %s225 = ssub.s32 1024, 1024
          %226 = vsyncadd [#allocation6], %s225
          %s227 = sshll.u32 [#allocation7], 4
          %s228 = int_to_ptr.vmem [resolvable:$true] %s227
          %233 = dma.hbm_to_vmem [thread:$0]  %s2, 1024, %s228, [#allocation6], 64, 64, 4
        $region16: #{tpu_custom_call.1} parent=11 // pred_fallthru
          _
        // Predicated region
        $region17: #{tpu_custom_call.1} parent=11 // pred_check
          %p234 = pneg %p117
        $region18: #{tpu_custom_call.1} parent=11 // pred_check_branch
          %236 = sbr.rel (%p234) target = $region20
        $region19: #{tpu_custom_call.1} parent=11 // pred_region
          _
        $region20: #{tpu_custom_call.1} parent=11 // pred_fallthru
          _
        // Predicated region
        $region21: #{tpu_custom_call.1} parent=11 // pred_check
          %p237 = pneg %p138
        $region22: #{tpu_custom_call.1} parent=11 // pred_check_branch
          %239 = sbr.rel (%p237) target = $region24
        $region23: #{tpu_custom_call.1} parent=11 // pred_region
          %s241 = ssub.s32 1024, 1024
          %242 = vsyncadd [#allocation9], %s241
          %s243 = sshll.u32 [#allocation8], 4
          %s244 = int_to_ptr.vmem [resolvable:$true] %s243
          %249 = dma.hbm_to_vmem [thread:$0]  %s4, 1024, %s244, [#allocation9], 64, 64, 4
        $region24: #{tpu_custom_call.1} parent=11 // pred_fallthru
          _
        // Predicated region
        $region25: #{tpu_custom_call.1} parent=11 // pred_check
          %p250 = pneg %p159
        $region26: #{tpu_custom_call.1} parent=11 // pred_check_branch
          %252 = sbr.rel (%p250) target = $region28
        $region27: #{tpu_custom_call.1} parent=11 // pred_region
          %s254 = ssub.s32 1024, 1024
          %255 = vsyncadd [#allocation9], %s254
          %s256 = sshll.u32 [#allocation10], 4
          %s257 = int_to_ptr.vmem [resolvable:$true] %s256
          %262 = dma.hbm_to_vmem [thread:$0]  %s5, 1024, %s257, [#allocation9], 64, 64, 4
        $region28: #{tpu_custom_call.1} parent=11 // pred_fallthru
          _
        // Predicated region
        $region29: #{tpu_custom_call.1} parent=11 // pred_check
          %p263 = pneg %p180
        $region30: #{tpu_custom_call.1} parent=11 // pred_check_branch
          %265 = sbr.rel (%p263) target = $region32
        $region31: #{tpu_custom_call.1} parent=11 // pred_region
          _
        $region32: #{tpu_custom_call.1} parent=11 // pred_fallthru
          _
      $region12: #{tpu_custom_call.1} parent=5 // pred_fallthru
        _
      %p266 = scmp.lt.s32.totalorder %s23, 2
      // Predicated region
      $region33: #{tpu_custom_call.1} parent=5 // pred_check
        %p267 = pneg %p266
      $region34: #{tpu_custom_call.1} parent=5 // pred_check_branch
        %269 = sbr.rel (%p267) target = $region36
      $region35: #{tpu_custom_call.1} parent=5 // pred_region
        // Predicated region
        $region37: #{tpu_custom_call.1} parent=35 // pred_check
          %p270 = pneg %p43
        $region38: #{tpu_custom_call.1} parent=35 // pred_check_branch
          %272 = sbr.rel (%p270) target = $region40
        $region39: #{tpu_custom_call.1} parent=35 // pred_region
          %s273 = sand.u32 %s33, 1
          %s274 = scalar_lea.sflag [#allocation3], %s273
          %s275 = sand.u32 %s33, 1
          %s276 = smul.addr %s275, 32
          %s277 = scalar_lea.vmem [#allocation2], %s276
          %s278 = smul.u32 8, %s23
          %s280 = ssub.s32 512, 512
          %281 = vsyncadd %s274, %s280
          %s282 = smul.addr %s278, 64
          %s283 = scalar_lea.hbm %s0, %s282
          %s284 = sshll.u32 %s277, 4
          %s285 = int_to_ptr.vmem [resolvable:$true] %s284
          %290 = dma.hbm_to_vmem [thread:$0]  %s283, 512, %s285, %s274, 64, 64, 4
        $region40: #{tpu_custom_call.1} parent=35 // pred_fallthru
          _
        // Predicated region
        $region41: #{tpu_custom_call.1} parent=35 // pred_check
          %p291 = pneg %p69
        $region42: #{tpu_custom_call.1} parent=35 // pred_check_branch
          %293 = sbr.rel (%p291) target = $region44
        $region43: #{tpu_custom_call.1} parent=35 // pred_region
          %s294 = sand.u32 %s23, 1
          %s295 = scalar_lea.sflag [#allocation6], %s294
          %s296 = sand.u32 %s59, 1
          %s297 = smul.addr %s296, 32
          %s298 = scalar_lea.vmem [#allocation5], %s297
          %s299 = smul.u32 8, %s23
          %s301 = ssub.s32 512, 512
          %302 = vsyncadd %s295, %s301
          %s303 = smul.addr %s299, 64
          %s304 = scalar_lea.hbm %s1, %s303
          %s305 = sshll.u32 %s298, 4
          %s306 = int_to_ptr.vmem [resolvable:$true] %s305
          %311 = dma.hbm_to_vmem [thread:$0]  %s304, 512, %s306, %s295, 64, 64, 4
        $region44: #{tpu_custom_call.1} parent=35 // pred_fallthru
          _
      $region36: #{tpu_custom_call.1} parent=5 // pred_fallthru
        _
      %p312 = scmp.le.s32.totalorder 1, %s23
      %p313 = scmp.lt.s32.totalorder %s23, 3
      %p314 = pnand %p312, %p313
      %p315 = pneg %p314
      // Predicated region
      $region45: #{tpu_custom_call.1} parent=5 // pred_check
        _
      $region46: #{tpu_custom_call.1} parent=5 // pred_check_branch
        %317 = sbr.rel (%p314) target = $region48
      $region47: #{tpu_custom_call.1} parent=5 // pred_region
        %s318 = ssub.s32 %s23, 1
        %s319 = sand.u32 %s36, 1
        %s320 = scalar_lea.sflag [#allocation3], %s319
        %s321 = sand.u32 %s36, 1
        %s322 = smul.addr %s321, 32
        %s323 = scalar_lea.vmem [#allocation2], %s322
        // Predicated region
        $region49: #{tpu_custom_call.1} parent=47 // pred_check
          %p324 = pneg %p49
        $region50: #{tpu_custom_call.1} parent=47 // pred_check_branch
          %326 = sbr.rel (%p324) target = $region52
        $region51: #{tpu_custom_call.1} parent=47 // pred_region
          %327 = dma.done %s320, 512
        $region52: #{tpu_custom_call.1} parent=47 // pred_fallthru
          _
        %s328 = sand.u32 %s28, 1
        %s329 = scalar_lea.sflag [#allocation6], %s328
        %s330 = sand.u32 %s62, 1
        %s331 = smul.addr %s330, 32
        %s332 = scalar_lea.vmem [#allocation5], %s331
        // Predicated region
        $region53: #{tpu_custom_call.1} parent=47 // pred_check
          %p333 = pneg %p75
        $region54: #{tpu_custom_call.1} parent=47 // pred_check_branch
          %335 = sbr.rel (%p333) target = $region56
        $region55: #{tpu_custom_call.1} parent=47 // pred_region
          %336 = dma.done %s329, 512
        $region56: #{tpu_custom_call.1} parent=47 // pred_fallthru
          _
        // Predicated region
        $region57: #{tpu_custom_call.1} parent=47 // pred_check
          %p337 = pneg %p96
        $region58: #{tpu_custom_call.1} parent=47 // pred_check_branch
          %339 = sbr.rel (%p337) target = $region60
        $region59: #{tpu_custom_call.1} parent=47 // pred_region
          %340 = dma.done [#allocation6], 1024
        $region60: #{tpu_custom_call.1} parent=47 // pred_fallthru
          _
        // Predicated region
        $region61: #{tpu_custom_call.1} parent=47 // pred_check
          %p341 = pneg %p138
        $region62: #{tpu_custom_call.1} parent=47 // pred_check_branch
          %343 = sbr.rel (%p341) target = $region64
        $region63: #{tpu_custom_call.1} parent=47 // pred_region
          %344 = dma.done [#allocation9], 1024
        $region64: #{tpu_custom_call.1} parent=47 // pred_fallthru
          _
        // Predicated region
        $region65: #{tpu_custom_call.1} parent=47 // pred_check
          %p345 = pneg %p159
        $region66: #{tpu_custom_call.1} parent=47 // pred_check_branch
          %347 = sbr.rel (%p345) target = $region68
        $region67: #{tpu_custom_call.1} parent=47 // pred_region
          %348 = dma.done [#allocation9], 1024
        $region68: #{tpu_custom_call.1} parent=47 // pred_fallthru
          _
        %s349 = sand.u32 %s36, 1
        %s350 = scalar_lea.sflag [#allocation3], %s349
        %s351 = sand.u32 %s36, 1
        %s352 = smul.addr %s351, 32
        %s353 = scalar_lea.vmem [#allocation2], %s352
        %p354 = pneg %p49
        %p355 = pneg %p46
        %s356 = sand.u32 %s28, 1
        %s357 = scalar_lea.sflag [#allocation6], %s356
        %s358 = sand.u32 %s62, 1
        %s359 = smul.addr %s358, 32
        %s360 = scalar_lea.vmem [#allocation5], %s359
        %p361 = pneg %p75
        %p362 = pneg %p72
        %p363 = pneg %p96
        %p364 = pneg %p93
        %p365 = pneg %p117
        %p366 = pneg %p114
        %p367 = pneg %p138
        %p368 = pneg %p135
        %p369 = pneg %p159
        %p370 = pneg %p156
        %p371 = pneg %p180
        %p372 = pneg %p177
        %p373 = pneg %p206
        %p374 = pneg %p203
        %s375 = sand.u32 %s193, 1
        %s376 = scalar_lea.sflag [#allocation4], %s375
        %s377 = sand.u32 %s193, 1
        %s378 = smul.addr %s377, 64
        %s379 = scalar_lea.vmem [#allocation11], %s378
        %s380 = smul.u32 8, %s28
        %s381 = smul.u32 8, %s28
        %s382 = smul.u32 8, %s28
        %v384 = vld [vmem:[%s323] sm:$0xf]
        %v385 = vld [vmem:[%s323 + $0x4] sm:$0xf]
        %v386 = vld [vmem:[%s323 + $0x8] sm:$0xf]
        %v387 = vld [vmem:[%s323 + $0xc] sm:$0xf]
        %v388 = vld [vmem:[%s323 + $0x10] sm:$0xf]
        %v389 = vld [vmem:[%s323 + $0x14] sm:$0xf]
        %v390 = vld [vmem:[%s323 + $0x18] sm:$0xf]
        %v391 = vld [vmem:[%s323 + $0x1c] sm:$0xf]
        %v392 = vld [vmem:[#allocation7] sm:$0xf]
        %v393 = vld [vmem:[#allocation7 + $0x4] sm:$0xf]
        %v394 = vld [vmem:[#allocation7 + $0x8] sm:$0xf]
        %v395 = vld [vmem:[#allocation7 + $0xc] sm:$0xf]
        %v396 = vld [vmem:[#allocation7 + $0x10] sm:$0xf]
        %v397 = vld [vmem:[#allocation7 + $0x14] sm:$0xf]
        %v398 = vld [vmem:[#allocation7 + $0x18] sm:$0xf]
        %v399 = vld [vmem:[#allocation7 + $0x1c] sm:$0xf]
        %v400 = vld [vmem:[#allocation7 + $0x20] sm:$0xf]
        %v401 = vld [vmem:[#allocation7 + $0x24] sm:$0xf]
        %v402 = vld [vmem:[#allocation7 + $0x28] sm:$0xf]
        %v403 = vld [vmem:[#allocation7 + $0x2c] sm:$0xf]
        %v404 = vld [vmem:[#allocation7 + $0x30] sm:$0xf]
        %v405 = vld [vmem:[#allocation7 + $0x34] sm:$0xf]
        %v406 = vld [vmem:[#allocation7 + $0x38] sm:$0xf]
        %v407 = vld [vmem:[#allocation7 + $0x3c] sm:$0xf]
        %v408 = vld [vmem:[%s3] sm:$0x1]
        %v410 = vlaneseq
        %v411 = vshrl.u32 %v410, 7
        %v412 = vsub.s32 0, %v411
        %v413 = vrot.slane %v408, %v412
        %v423 = vunpack.c.l.b16 %v384
        %v424 = vunpack.c.l.b16 %v385
        %v425 = vunpack.c.l.b16 %v386
        %v426 = vunpack.c.l.b16 %v387
        %v427 = vunpack.c.l.b16 %v388
        %v428 = vunpack.c.l.b16 %v389
        %v429 = vunpack.c.l.b16 %v390
        %v430 = vunpack.c.l.b16 %v391
        %v431 = vpack.c.b16 %v424, %v423
        %v432 = vpack.c.b16 %v426, %v425
        %v433 = vpack.c.b16 %v428, %v427
        %v434 = vpack.c.b16 %v430, %v429
        %v455 = vunpack.c.l.b16 %v392
        %v456 = vunpack.c.l.b16 %v393
        %v457 = vunpack.c.l.b16 %v394
        %v458 = vunpack.c.l.b16 %v395
        %v459 = vunpack.c.l.b16 %v396
        %v460 = vunpack.c.l.b16 %v397
        %v461 = vunpack.c.l.b16 %v398
        %v462 = vunpack.c.l.b16 %v399
        %v463 = vunpack.c.l.b16 %v400
        %v464 = vunpack.c.l.b16 %v401
        %v465 = vunpack.c.l.b16 %v402
        %v466 = vunpack.c.l.b16 %v403
        %v467 = vunpack.c.l.b16 %v404
        %v468 = vunpack.c.l.b16 %v405
        %v469 = vunpack.c.l.b16 %v406
        %v470 = vunpack.c.l.b16 %v407
        %v471 = vpack.c.b16 %v456, %v455
        %v472 = vpack.c.b16 %v458, %v457
        %v473 = vpack.c.b16 %v460, %v459
        %v474 = vpack.c.b16 %v462, %v461
        %v475 = vpack.c.b16 %v464, %v463
        %v476 = vpack.c.b16 %v466, %v465
        %v477 = vpack.c.b16 %v468, %v467
        %v478 = vpack.c.b16 %v470, %v469
        %487 = vmatprep.subr.bf16.mxu0 0
        %488 = vmatpush1.bf16.msra.mxu0 %v471
        %489 = vmatprep.subr.bf16.mxu0 0
        %490 = vmatpush1.bf16.msra.mxu0 %v472
        %491 = vmatprep.subr.bf16.mxu0 0
        %492 = vmatpush1.bf16.msra.mxu0 %v473
        %493 = vmatprep.subr.bf16.mxu0 0
        %494 = vmatpush1.bf16.msra.mxu0 %v474
        %495 = vmatprep.subr.bf16.mxu0 0
        %496 = vmatpush1.bf16.msra.mxu0 %v475
        %497 = vmatprep.subr.bf16.mxu0 0
        %498 = vmatpush1.bf16.msra.mxu0 %v476
        %499 = vmatprep.subr.bf16.mxu0 0
        %500 = vmatpush1.bf16.msra.mxu0 %v477
        %501 = vmatprep.subr.bf16.mxu0 0
        %502 = vmatpush1.bf16.msra.mxu0 %v478
        %503 = vmatprep.subr.bf16.mxu0 0
        %504 = vmatpush1.bf16.msra.mxu0 0
        %505 = vmatprep.subr.bf16.mxu0 0
        %506 = vmatpush1.bf16.msra.mxu0 0
        %507 = vmatprep.subr.bf16.mxu0 0
        %508 = vmatpush1.bf16.msra.mxu0 0
        %509 = vmatprep.subr.bf16.mxu0 0
        %510 = vmatpush1.bf16.msra.mxu0 0
        %511 = vmatprep.subr.bf16.mxu0 0
        %512 = vmatpush1.bf16.msra.mxu0 0
        %513 = vmatprep.subr.bf16.mxu0 0
        %514 = vmatpush1.bf16.msra.mxu0 0
        %515 = vmatprep.subr.bf16.mxu0 0
        %516 = vmatpush1.bf16.msra.mxu0 0
        %517 = vmatprep.subr.bf16.mxu0 0
        %518 = vmatpush1.bf16.msra.mxu0 0
        %519 = vmatprep.mubr.bf16.mxu0 0
        %520 = vmatmul.mubr.bf16.gmra.mrb[0].mxu0 %v431
        %v521 = vpop.f32.mrb[0].mxu0
        %v522 = vadd.f32 %v413, %v521
        %v523 = vpop.f32.mrb[0].mxu0
        %v524 = vpop.f32.mrb[0].mxu0
        %v525 = vadd.f32 %v413, %v524
        %v526 = vpop.f32.mrb[0].mxu0
        %527 = vmatprep.mubr.bf16.mxu0 0
        %528 = vmatmul.mubr.bf16.gmra.mrb[0].mxu0 %v432
        %v529 = vpop.f32.mrb[0].mxu0
        %v530 = vadd.f32 %v413, %v529
        %v531 = vpop.f32.mrb[0].mxu0
        %v532 = vpop.f32.mrb[0].mxu0
        %v533 = vadd.f32 %v413, %v532
        %v534 = vpop.f32.mrb[0].mxu0
        %535 = vmatprep.mubr.bf16.mxu0 0
        %536 = vmatmul.mubr.bf16.gmra.mrb[0].mxu0 %v433
        %v537 = vpop.f32.mrb[0].mxu0
        %v538 = vadd.f32 %v413, %v537
        %v539 = vpop.f32.mrb[0].mxu0
        %v540 = vpop.f32.mrb[0].mxu0
        %v541 = vadd.f32 %v413, %v540
        %v542 = vpop.f32.mrb[0].mxu0
        %543 = vmatprep.mubr.bf16.mxu0 0
        %544 = vmatmul.mubr.bf16.gmra.mrb[0].mxu0 %v434
        %v545 = vpop.f32.mrb[0].mxu0
        %v546 = vadd.f32 %v413, %v545
        %v547 = vpop.f32.mrb[0].mxu0
        %v548 = vpop.f32.mrb[0].mxu0
        %v549 = vadd.f32 %v413, %v548
        %v550 = vpop.f32.mrb[0].mxu0
        %551 = vdwg.mxu0
        %v552 = vmax.f32 %v522, 0.0
        %v553 = vmax.f32 %v525, 0.0
        %v554 = vmax.f32 %v530, 0.0
        %v555 = vmax.f32 %v533, 0.0
        %v556 = vmax.f32 %v538, 0.0
        %v557 = vmax.f32 %v541, 0.0
        %v558 = vmax.f32 %v546, 0.0
        %v559 = vmax.f32 %v549, 0.0
        %v560 = vpack.c.bf16 %v553, %v552
        %v561 = vpack.c.bf16 %v555, %v554
        %v562 = vpack.c.bf16 %v557, %v556
        %v563 = vpack.c.bf16 %v559, %v558
        %v564 = vld [vmem:[#allocation8] sm:$0xf]
        %v565 = vld [vmem:[#allocation8 + $0x4] sm:$0xf]
        %v566 = vld [vmem:[#allocation8 + $0x8] sm:$0xf]
        %v567 = vld [vmem:[#allocation8 + $0xc] sm:$0xf]
        %v568 = vld [vmem:[#allocation8 + $0x10] sm:$0xf]
        %v569 = vld [vmem:[#allocation8 + $0x14] sm:$0xf]
        %v570 = vld [vmem:[#allocation8 + $0x18] sm:$0xf]
        %v571 = vld [vmem:[#allocation8 + $0x1c] sm:$0xf]
        %v572 = vld [vmem:[#allocation8 + $0x20] sm:$0xf]
        %v573 = vld [vmem:[#allocation8 + $0x24] sm:$0xf]
        %v574 = vld [vmem:[#allocation8 + $0x28] sm:$0xf]
        %v575 = vld [vmem:[#allocation8 + $0x2c] sm:$0xf]
        %v576 = vld [vmem:[#allocation8 + $0x30] sm:$0xf]
        %v577 = vld [vmem:[#allocation8 + $0x34] sm:$0xf]
        %v578 = vld [vmem:[#allocation8 + $0x38] sm:$0xf]
        %v579 = vld [vmem:[#allocation8 + $0x3c] sm:$0xf]
        %v580 = vld [vmem:[%s332] sm:$0xf]
        %v581 = vld [vmem:[%s332 + $0x4] sm:$0xf]
        %v582 = vld [vmem:[%s332 + $0x8] sm:$0xf]
        %v583 = vld [vmem:[%s332 + $0xc] sm:$0xf]
        %v584 = vld [vmem:[%s332 + $0x10] sm:$0xf]
        %v585 = vld [vmem:[%s332 + $0x14] sm:$0xf]
        %v586 = vld [vmem:[%s332 + $0x18] sm:$0xf]
        %v587 = vld [vmem:[%s332 + $0x1c] sm:$0xf]
        %v588 = vld [vmem:[#allocation10] sm:$0xf]
        %v589 = vld [vmem:[#allocation10 + $0x4] sm:$0xf]
        %v590 = vld [vmem:[#allocation10 + $0x8] sm:$0xf]
        %v591 = vld [vmem:[#allocation10 + $0xc] sm:$0xf]
        %v592 = vld [vmem:[#allocation10 + $0x10] sm:$0xf]
        %v593 = vld [vmem:[#allocation10 + $0x14] sm:$0xf]
        %v594 = vld [vmem:[#allocation10 + $0x18] sm:$0xf]
        %v595 = vld [vmem:[#allocation10 + $0x1c] sm:$0xf]
        %v596 = vld [vmem:[#allocation10 + $0x20] sm:$0xf]
        %v597 = vld [vmem:[#allocation10 + $0x24] sm:$0xf]
        %v598 = vld [vmem:[#allocation10 + $0x28] sm:$0xf]
        %v599 = vld [vmem:[#allocation10 + $0x2c] sm:$0xf]
        %v600 = vld [vmem:[#allocation10 + $0x30] sm:$0xf]
        %v601 = vld [vmem:[#allocation10 + $0x34] sm:$0xf]
        %v602 = vld [vmem:[#allocation10 + $0x38] sm:$0xf]
        %v603 = vld [vmem:[#allocation10 + $0x3c] sm:$0xf]
        %v612 = vunpack.c.l.b16 %v580
        %v613 = vunpack.c.l.b16 %v581
        %v614 = vunpack.c.l.b16 %v582
        %v615 = vunpack.c.l.b16 %v583
        %v616 = vunpack.c.l.b16 %v584
        %v617 = vunpack.c.l.b16 %v585
        %v618 = vunpack.c.l.b16 %v586
        %v619 = vunpack.c.l.b16 %v587
        %v620 = vpack.c.b16 %v613, %v612
        %v621 = vpack.c.b16 %v615, %v614
        %v622 = vpack.c.b16 %v617, %v616
        %v623 = vpack.c.b16 %v619, %v618
        %v644 = vunpack.c.l.b16 %v588
        %v645 = vunpack.c.l.b16 %v589
        %v646 = vunpack.c.l.b16 %v590
        %v647 = vunpack.c.l.b16 %v591
        %v648 = vunpack.c.l.b16 %v592
        %v649 = vunpack.c.l.b16 %v593
        %v650 = vunpack.c.l.b16 %v594
        %v651 = vunpack.c.l.b16 %v595
        %v652 = vunpack.c.l.b16 %v596
        %v653 = vunpack.c.l.b16 %v597
        %v654 = vunpack.c.l.b16 %v598
        %v655 = vunpack.c.l.b16 %v599
        %v656 = vunpack.c.l.b16 %v600
        %v657 = vunpack.c.l.b16 %v601
        %v658 = vunpack.c.l.b16 %v602
        %v659 = vunpack.c.l.b16 %v603
        %v660 = vpack.c.b16 %v645, %v644
        %v661 = vpack.c.b16 %v647, %v646
        %v662 = vpack.c.b16 %v649, %v648
        %v663 = vpack.c.b16 %v651, %v650
        %v664 = vpack.c.b16 %v653, %v652
        %v665 = vpack.c.b16 %v655, %v654
        %v666 = vpack.c.b16 %v657, %v656
        %v667 = vpack.c.b16 %v659, %v658
        %676 = vmatprep.subr.bf16.mxu0 0
        %677 = vmatpush1.bf16.msra.mxu0 %v660
        %678 = vmatprep.subr.bf16.mxu0 0
        %679 = vmatpush1.bf16.msra.mxu0 %v661
        %680 = vmatprep.subr.bf16.mxu0 0
        %681 = vmatpush1.bf16.msra.mxu0 %v662
        %682 = vmatprep.subr.bf16.mxu0 0
        %683 = vmatpush1.bf16.msra.mxu0 %v663
        %684 = vmatprep.subr.bf16.mxu0 0
        %685 = vmatpush1.bf16.msra.mxu0 %v664
        %686 = vmatprep.subr.bf16.mxu0 0
        %687 = vmatpush1.bf16.msra.mxu0 %v665
        %688 = vmatprep.subr.bf16.mxu0 0
        %689 = vmatpush1.bf16.msra.mxu0 %v666
        %690 = vmatprep.subr.bf16.mxu0 0
        %691 = vmatpush1.bf16.msra.mxu0 %v667
        %692 = vmatprep.subr.bf16.mxu0 0
        %693 = vmatpush1.bf16.msra.mxu0 0
        %694 = vmatprep.subr.bf16.mxu0 0
        %695 = vmatpush1.bf16.msra.mxu0 0
        %696 = vmatprep.subr.bf16.mxu0 0
        %697 = vmatpush1.bf16.msra.mxu0 0
        %698 = vmatprep.subr.bf16.mxu0 0
        %699 = vmatpush1.bf16.msra.mxu0 0
        %700 = vmatprep.subr.bf16.mxu0 0
        %701 = vmatpush1.bf16.msra.mxu0 0
        %702 = vmatprep.subr.bf16.mxu0 0
        %703 = vmatpush1.bf16.msra.mxu0 0
        %704 = vmatprep.subr.bf16.mxu0 0
        %705 = vmatpush1.bf16.msra.mxu0 0
        %706 = vmatprep.subr.bf16.mxu0 0
        %707 = vmatpush1.bf16.msra.mxu0 0
        %708 = vmatprep.mubr.bf16.mxu0 0
        %709 = vmatmul.mubr.bf16.gmra.mrb[0].mxu0 %v620
        %v710 = vpop.f32.mrb[0].mxu0
        %v711 = vadd.f32 0.0, %v710
        %v712 = vpop.f32.mrb[0].mxu0
        %v713 = vpop.f32.mrb[0].mxu0
        %v714 = vadd.f32 0.0, %v713
        %v715 = vpop.f32.mrb[0].mxu0
        %716 = vmatprep.mubr.bf16.mxu0 0
        %717 = vmatmul.mubr.bf16.gmra.mrb[0].mxu0 %v621
        %v718 = vpop.f32.mrb[0].mxu0
        %v719 = vadd.f32 0.0, %v718
        %v720 = vpop.f32.mrb[0].mxu0
        %v721 = vpop.f32.mrb[0].mxu0
        %v722 = vadd.f32 0.0, %v721
        %v723 = vpop.f32.mrb[0].mxu0
        %724 = vmatprep.mubr.bf16.mxu0 0
        %725 = vmatmul.mubr.bf16.gmra.mrb[0].mxu0 %v622
        %v726 = vpop.f32.mrb[0].mxu0
        %v727 = vadd.f32 0.0, %v726
        %v728 = vpop.f32.mrb[0].mxu0
        %v729 = vpop.f32.mrb[0].mxu0
        %v730 = vadd.f32 0.0, %v729
        %v731 = vpop.f32.mrb[0].mxu0
        %732 = vmatprep.mubr.bf16.mxu0 0
        %733 = vmatmul.mubr.bf16.gmra.mrb[0].mxu0 %v623
        %v734 = vpop.f32.mrb[0].mxu0
        %v735 = vadd.f32 0.0, %v734
        %v736 = vpop.f32.mrb[0].mxu0
        %v737 = vpop.f32.mrb[0].mxu0
        %v738 = vadd.f32 0.0, %v737
        %v739 = vpop.f32.mrb[0].mxu0
        %740 = vdwg.mxu0
        %v757 = vunpack.c.l.b16 %v564
        %v758 = vunpack.c.l.b16 %v565
        %v759 = vunpack.c.l.b16 %v566
        %v760 = vunpack.c.l.b16 %v567
        %v761 = vunpack.c.l.b16 %v568
        %v762 = vunpack.c.l.b16 %v569
        %v763 = vunpack.c.l.b16 %v570
        %v764 = vunpack.c.l.b16 %v571
        %v765 = vunpack.c.l.b16 %v572
        %v766 = vunpack.c.l.b16 %v573
        %v767 = vunpack.c.l.b16 %v574
        %v768 = vunpack.c.l.b16 %v575
        %v769 = vunpack.c.l.b16 %v576
        %v770 = vunpack.c.l.b16 %v577
        %v771 = vunpack.c.l.b16 %v578
        %v772 = vunpack.c.l.b16 %v579
        %v773 = vpack.c.b16 %v758, %v757
        %v774 = vpack.c.b16 %v760, %v759
        %v775 = vpack.c.b16 %v762, %v761
        %v776 = vpack.c.b16 %v764, %v763
        %v777 = vpack.c.b16 %v766, %v765
        %v778 = vpack.c.b16 %v768, %v767
        %v779 = vpack.c.b16 %v770, %v769
        %v780 = vpack.c.b16 %v772, %v771
        %789 = vmatprep.subr.bf16.mxu0 0
        %790 = vmatpush1.bf16.msra.mxu0 %v773
        %791 = vmatprep.subr.bf16.mxu0 0
        %792 = vmatpush1.bf16.msra.mxu0 %v774
        %793 = vmatprep.subr.bf16.mxu0 0
        %794 = vmatpush1.bf16.msra.mxu0 %v775
        %795 = vmatprep.subr.bf16.mxu0 0
        %796 = vmatpush1.bf16.msra.mxu0 %v776
        %797 = vmatprep.subr.bf16.mxu0 0
        %798 = vmatpush1.bf16.msra.mxu0 %v777
        %799 = vmatprep.subr.bf16.mxu0 0
        %800 = vmatpush1.bf16.msra.mxu0 %v778
        %801 = vmatprep.subr.bf16.mxu0 0
        %802 = vmatpush1.bf16.msra.mxu0 %v779
        %803 = vmatprep.subr.bf16.mxu0 0
        %804 = vmatpush1.bf16.msra.mxu0 %v780
        %805 = vmatprep.subr.bf16.mxu0 0
        %806 = vmatpush1.bf16.msra.mxu0 0
        %807 = vmatprep.subr.bf16.mxu0 0
        %808 = vmatpush1.bf16.msra.mxu0 0
        %809 = vmatprep.subr.bf16.mxu0 0
        %810 = vmatpush1.bf16.msra.mxu0 0
        %811 = vmatprep.subr.bf16.mxu0 0
        %812 = vmatpush1.bf16.msra.mxu0 0
        %813 = vmatprep.subr.bf16.mxu0 0
        %814 = vmatpush1.bf16.msra.mxu0 0
        %815 = vmatprep.subr.bf16.mxu0 0
        %816 = vmatpush1.bf16.msra.mxu0 0
        %817 = vmatprep.subr.bf16.mxu0 0
        %818 = vmatpush1.bf16.msra.mxu0 0
        %819 = vmatprep.subr.bf16.mxu0 0
        %820 = vmatpush1.bf16.msra.mxu0 0
        %821 = vmatprep.mubr.bf16.mxu0 0
        %822 = vmatmul.mubr.bf16.gmra.mrb[0].mxu0 %v560
        %v823 = vpop.f32.mrb[0].mxu0
        %v824 = vadd.f32 %v711, %v823
        %v825 = vpop.f32.mrb[0].mxu0
        %v826 = vpop.f32.mrb[0].mxu0
        %v827 = vadd.f32 %v714, %v826
        %v828 = vpop.f32.mrb[0].mxu0
        %829 = vmatprep.mubr.bf16.mxu0 0
        %830 = vmatmul.mubr.bf16.gmra.mrb[0].mxu0 %v561
        %v831 = vpop.f32.mrb[0].mxu0
        %v832 = vadd.f32 %v719, %v831
        %v833 = vpop.f32.mrb[0].mxu0
        %v834 = vpop.f32.mrb[0].mxu0
        %v835 = vadd.f32 %v722, %v834
        %v836 = vpop.f32.mrb[0].mxu0
        %837 = vmatprep.mubr.bf16.mxu0 0
        %838 = vmatmul.mubr.bf16.gmra.mrb[0].mxu0 %v562
        %v839 = vpop.f32.mrb[0].mxu0
        %v840 = vadd.f32 %v727, %v839
        %v841 = vpop.f32.mrb[0].mxu0
        %v842 = vpop.f32.mrb[0].mxu0
        %v843 = vadd.f32 %v730, %v842
        %v844 = vpop.f32.mrb[0].mxu0
        %845 = vmatprep.mubr.bf16.mxu0 0
        %846 = vmatmul.mubr.bf16.gmra.mrb[0].mxu0 %v563
        %v847 = vpop.f32.mrb[0].mxu0
        %v848 = vadd.f32 %v735, %v847
        %v849 = vpop.f32.mrb[0].mxu0
        %v850 = vpop.f32.mrb[0].mxu0
        %v851 = vadd.f32 %v738, %v850
        %v852 = vpop.f32.mrb[0].mxu0
        %853 = vdwg.mxu0
        %v854 = vld [vmem:[%s6] sm:$0x1]
        %v856 = vlaneseq
        %v857 = vshrl.u32 %v856, 7
        %v858 = vsub.s32 0, %v857
        %v859 = vrot.slane %v854, %v858
        %v861 = vadd.f32 %v824, %v859
        %v862 = vadd.f32 %v827, %v859
        %v863 = vadd.f32 %v832, %v859
        %v864 = vadd.f32 %v835, %v859
        %v865 = vadd.f32 %v840, %v859
        %v866 = vadd.f32 %v843, %v859
        %v867 = vadd.f32 %v848, %v859
        %v868 = vadd.f32 %v851, %v859
        %v869 = vmax.f32 %v861, 0.0
        %v870 = vmax.f32 %v862, 0.0
        %v871 = vmax.f32 %v863, 0.0
        %v872 = vmax.f32 %v864, 0.0
        %v873 = vmax.f32 %v865, 0.0
        %v874 = vmax.f32 %v866, 0.0
        %v875 = vmax.f32 %v867, 0.0
        %v876 = vmax.f32 %v868, 0.0
        %877 = vst [vmem:[%s379] sm:$0xff] %v869
        %878 = vst [vmem:[%s379 + $0x8] sm:$0xff] %v870
        %879 = vst [vmem:[%s379 + $0x10] sm:$0xff] %v871
        %880 = vst [vmem:[%s379 + $0x18] sm:$0xff] %v872
        %881 = vst [vmem:[%s379 + $0x20] sm:$0xff] %v873
        %882 = vst [vmem:[%s379 + $0x28] sm:$0xff] %v874
        %883 = vst [vmem:[%s379 + $0x30] sm:$0xff] %v875
        %884 = vst [vmem:[%s379 + $0x38] sm:$0xff] %v876
        %s885 = sand.u32 %s193, 1
        %s886 = scalar_lea.sflag [#allocation4], %s885
        %s887 = sand.u32 %s193, 1
        %s888 = smul.addr %s887, 64
        %s889 = scalar_lea.vmem [#allocation11], %s888
        // Predicated region
        $region69: #{tpu_custom_call.1} parent=47 // pred_check
          %p890 = pneg %p203
        $region70: #{tpu_custom_call.1} parent=47 // pred_check_branch
          %892 = sbr.rel (%p890) target = $region72
        $region71: #{tpu_custom_call.1} parent=47 // pred_region
          %s893 = smul.u32 8, %s28
          %s895 = ssub.s32 1024, 1024
          %896 = vsyncadd %s886, %s895
          %s897 = smul.addr %s893, 128
          %s898 = scalar_lea.hbm %s7, %s897
          %s899 = sshll.u32 %s889, 4
          %s900 = int_to_ptr.vmem [resolvable:$true] %s899
          %905 = dma.vmem_to_hbm [thread:$0]  %s900, 1024, %s898, %s886, 128, 128, 8
        $region72: #{tpu_custom_call.1} parent=47 // pred_fallthru
          _
      $region48: #{tpu_custom_call.1} parent=5 // pred_fallthru
        _
      %p906 = scmp.le.s32.totalorder 2, %s23
      // Predicated region
      $region73: #{tpu_custom_call.1} parent=5 // pred_check
        %p907 = pneg %p906
      $region74: #{tpu_custom_call.1} parent=5 // pred_check_branch
        %909 = sbr.rel (%p907) target = $region76
      $region75: #{tpu_custom_call.1} parent=5 // pred_region
        %s910 = ssub.s32 %s23, 2
        // Predicated region
        $region77: #{tpu_custom_call.1} parent=75 // pred_check
          %p911 = pneg %p209
        $region78: #{tpu_custom_call.1} parent=75 // pred_check_branch
          %913 = sbr.rel (%p911) target = $region80
        $region79: #{tpu_custom_call.1} parent=75 // pred_region
          %s914 = sand.u32 %s194, 1
          %s915 = scalar_lea.sflag [#allocation4], %s914
          %s916 = sand.u32 %s194, 1
          %s917 = smul.addr %s916, 64
          %s918 = scalar_lea.vmem [#allocation11], %s917
          %919 = dma.done %s915, 1024
        $region80: #{tpu_custom_call.1} parent=75 // pred_fallthru
          _
      $region76: #{tpu_custom_call.1} parent=5 // pred_fallthru
        _
    $region6: #{tpu_custom_call.1} parent=1 // loop_footer
      %s27 = sadd.s32 1, %s23
    $region7: #{tpu_custom_call.1} parent=1 // loop_footer_branch
      %22 = sbr.rel target = $region3
    $region8: #{tpu_custom_call.1} parent=1 // loop_exit
      _
    %920 = vsyncpa [#allocation3], 1
    %s921 = scalar_lea.sflag [#allocation3], 1
    %922 = vsyncpa %s921, 1
    %923 = vsyncpa [#allocation6], 1
    %s924 = scalar_lea.sflag [#allocation6], 1
    %925 = vsyncpa %s924, 1
    %926 = vsyncpa [#allocation9], 1
    %927 = vsyncpa [#allocation4], 1
    %s928 = scalar_lea.sflag [#allocation4], 1
    %929 = vsyncpa %s928, 1

</llo_original>
